<compile_context>
chip_gen: v7x
topology: tpu7x:2x2x1
jax: 0.10.0
libtpu: 0.0.40
codegen_flags: <defaults>
</compile_context>

<pallas_src>
import math
import functools

import jax
import jax.numpy as jnp
from jax.experimental import pallas as pl
from jax.experimental.pallas import tpu as pltpu


def _qkv_projection_kernel(q_ref, k_ref, v_ref,
                           wq_ref, wk_ref, wv_ref,
                           bk_ref, bv_ref,
                           qp_ref, kp_ref, vp_ref):
    # Whole (B*L, D) activations and (D, D) pre-transposed weights live in VMEM;
    # three big MXU matmuls, no in-kernel transposes, one store each.
    q = q_ref[...].astype(jnp.float32)
    k = k_ref[...].astype(jnp.float32)
    v = v_ref[...].astype(jnp.float32)

    qp_ref[...] = jnp.dot(q, wq_ref[...].astype(jnp.float32),
                          preferred_element_type=jnp.float32).astype(qp_ref.dtype)
    kp_ref[...] = (jnp.dot(k, wk_ref[...].astype(jnp.float32),
                           preferred_element_type=jnp.float32)
                   + bk_ref[...].astype(jnp.float32)).astype(kp_ref.dtype)
    vp_ref[...] = (jnp.dot(v, wv_ref[...].astype(jnp.float32),
                           preferred_element_type=jnp.float32)
                   + bv_ref[...].astype(jnp.float32)).astype(vp_ref.dtype)


def _attention_kernel(qh_ref, kh_ref, vh_ref, wo_ref, bo_ref,
                      out_ref, attn_ref, *, n_batch, n_heads, scale):
    # qh/kh/vh: (G, L, E) with G = B*H (heads already batched on the leading axis
    # by the wrapper) -> batched MXU matmuls, no per-head lane slicing.
    q = qh_ref[...].astype(jnp.float32)
    k = kh_ref[...].astype(jnp.float32)
    v = vh_ref[...].astype(jnp.float32)

    # Head-batched scores: (G, L, L).
    s = jnp.einsum('gle,gse->gls', q, k,
                   preferred_element_type=jnp.float32) * scale

    # Softmax over the key axis. EUP reciprocal seed + one Newton step: frees
    # VALU slots while keeping ~f32 accuracy (passes the 1e-4 check).
    m = jnp.max(s, axis=-1, keepdims=True)
    p = jnp.exp(s - m)
    denom = jnp.sum(p, axis=-1, keepdims=True)
    r = pl.reciprocal(denom, approx=True)
    r = r * (2.0 - denom * r)          # Newton refinement -> near-exact 1/denom
    a = p * r

    # Single full-block store of the attention weights (one store per call).
    attn_ref[...] = a.astype(attn_ref.dtype)

    # Per-head context and output projection folded per head:
    #   ctx: (G, L, E);  wo_ref: (G, E, D) (per-head Wo blocks, pre-transposed &
    #   tiled over batch in the wrapper);  proj: (G, L, D).
    ctx = jnp.einsum('gls,gse->gle', a, v, preferred_element_type=jnp.float32)
    proj = jnp.einsum('gle,ged->gld', ctx, wo_ref[...].astype(jnp.float32),
                      preferred_element_type=jnp.float32)

    L = proj.shape[1]
    D = proj.shape[2]
    # Leading-dim reshape + sum over the head axis (outer-dim reduce, cheap).
    out = proj.reshape(n_batch, n_heads, L, D).sum(axis=1)
    out_ref[...] = (out + bo_ref[...].astype(jnp.float32)).astype(out_ref.dtype)


@functools.partial(jax.jit, static_argnames=("n_heads",))
def attention_layer(queries, keys, values, params, n_heads):
    B, L, D = queries.shape
    H = n_heads
    E = D // H
    wq, wk, bk, wv, bv, wo, bo = params

    # ---- wrapper-side layout plumbing (free for XLA) ------------------------
    q2 = queries.reshape(B * L, D)
    k2 = keys.reshape(B * L, D)
    v2 = values.reshape(B * L, D)
    wq_t = wq.T                       # (D, D): kernel computes x @ W directly
    wk_t = wk.T
    wv_t = wv.T
    bk2 = bk.reshape(1, D)
    bv2 = bv.reshape(1, D)
    bo2 = bo.reshape(1, D)
    # Wo split into per-head (E, D) blocks (Wo[:, h*E:(h+1)*E].T) and tiled over
    # batch so the kernel can do one batched (L,E)x(E,D) matmul over G = B*H.
    wo_heads = wo.T.reshape(H, E, D)
    wo_g = jnp.tile(wo_heads[None], (B, 1, 1, 1)).reshape(B * H, E, D)

    # ---- kernel 1: fused-batch QKV projections ------------------------------
    qp, kp, vp = pl.pallas_call(
        _qkv_projection_kernel,
        grid=(1,),
        in_specs=[
            pl.BlockSpec((B * L, D), lambda i: (0, 0)),   # queries (flat)
            pl.BlockSpec((B * L, D), lambda i: (0, 0)),   # keys (flat)
            pl.BlockSpec((B * L, D), lambda i: (0, 0)),   # values (flat)
            pl.BlockSpec((D, D), lambda i: (0, 0)),       # Wq^T
            pl.BlockSpec((D, D), lambda i: (0, 0)),       # Wk^T
            pl.BlockSpec((D, D), lambda i: (0, 0)),       # Wv^T
            pl.BlockSpec((1, D), lambda i: (0, 0)),       # bk
            pl.BlockSpec((1, D), lambda i: (0, 0)),       # bv
        ],
        out_specs=[
            pl.BlockSpec((B * L, D), lambda i: (0, 0)),
            pl.BlockSpec((B * L, D), lambda i: (0, 0)),
            pl.BlockSpec((B * L, D), lambda i: (0, 0)),
        ],
        out_shape=(
            jax.ShapeDtypeStruct((B * L, D), jnp.float32),
            jax.ShapeDtypeStruct((B * L, D), jnp.float32),
            jax.ShapeDtypeStruct((B * L, D), jnp.float32),
        ),
        compiler_params=pltpu.CompilerParams(
            dimension_semantics=("arbitrary",)),
    )(q2, k2, v2, wq_t, wk_t, wv_t, bk2, bv2)

    # Heads to the leading batch axis (free layout plumbing in the wrapper).
    def to_heads(x):
        return x.reshape(B, L, H, E).transpose(0, 2, 1, 3).reshape(B * H, L, E)

    qh = to_heads(qp)
    kh = to_heads(kp)
    vh = to_heads(vp)

    # ---- kernel 2: head-batched attention + folded output projection --------
    attn_kernel = functools.partial(
        _attention_kernel, n_batch=B, n_heads=H, scale=1.0 / math.sqrt(E))

    out, attn_g = pl.pallas_call(
        attn_kernel,
        grid=(1,),
        in_specs=[
            pl.BlockSpec((B * H, L, E), lambda i: (0, 0, 0)),   # q heads
            pl.BlockSpec((B * H, L, E), lambda i: (0, 0, 0)),   # k heads
            pl.BlockSpec((B * H, L, E), lambda i: (0, 0, 0)),   # v heads
            pl.BlockSpec((B * H, E, D), lambda i: (0, 0, 0)),   # Wo per-head
            pl.BlockSpec((1, D), lambda i: (0, 0)),             # bo
        ],
        out_specs=[
            pl.BlockSpec((B, L, D), lambda i: (0, 0, 0)),       # out
            pl.BlockSpec((B * H, L, L), lambda i: (0, 0, 0)),   # attn (B*H, L, L)
        ],
        out_shape=(
            jax.ShapeDtypeStruct((B, L, D), queries.dtype),
            jax.ShapeDtypeStruct((B * H, L, L), jnp.float32),
        ),
        compiler_params=pltpu.CompilerParams(
            dimension_semantics=("arbitrary",)),
    )(qh, kh, vh, wo_g, bo2)

    attn = attn_g.reshape(B, H, L, L)
    # TODO(synk): at toy sizes (L=8) the attn output cannot be made lane-dense
    # (128 lanes); for large L switch to a q-tiled / flash-style formulation.
    return out, attn


def _reference(queries, keys, values, params, n_heads):
    wq, wk, bk, wv, bv, wo, bo = params
    B, L, D = queries.shape
    H = n_heads
    E = D // H
    q = (queries @ wq.T).reshape(B, L, H, E)
    k = (keys @ wk.T + bk).reshape(B, L, H, E)
    v = (values @ wv.T + bv).reshape(B, L, H, E)
    scores = jnp.einsum('blhe,bshe->bhls', q, k)
    attn = jax.nn.softmax(scores / math.sqrt(E), axis=-1)
    V = jnp.einsum('bhls,bshd->blhd', attn, v).reshape(B, L, D)
    out = V @ wo.T + bo
    return out, attn


if __name__ == "__main__":
    B, L, d_model, n_heads = 2, 8, 32, 4

    key = jax.random.PRNGKey(0)
    ks = jax.random.split(key, 10)
    scale = 1.0 / math.sqrt(d_model)
    wq = jax.random.uniform(ks[0], (d_model, d_model), jnp.float32, -scale, scale)
    wk = jax.random.uniform(ks[1], (d_model, d_model), jnp.float32, -scale, scale)
    bk = jax.random.uniform(ks[2], (d_model,), jnp.float32, -scale, scale)
    wv = jax.random.uniform(ks[3], (d_model, d_model), jnp.float32, -scale, scale)
    bv = jax.random.uniform(ks[4], (d_model,), jnp.float32, -scale, scale)
    wo = jax.random.uniform(ks[5], (d_model, d_model), jnp.float32, -scale, scale)
    bo = jax.random.uniform(ks[6], (d_model,), jnp.float32, -scale, scale)
    params = (wq, wk, bk, wv, bv, wo, bo)

    queries = jax.random.normal(ks[7], (B, L, d_model), jnp.float32)
    keys = jax.random.normal(ks[8], (B, L, d_model), jnp.float32)
    values = jax.random.normal(ks[9], (B, L, d_model), jnp.float32)

    out, attn = attention_layer(queries, keys, values, params, n_heads=n_heads)
    jax.block_until_ready((out, attn))

    ref_out, ref_attn = _reference(queries, keys, values, params, n_heads)
    assert jnp.allclose(out, ref_out, atol=1e-4, rtol=1e-4), "out mismatch"
    assert jnp.allclose(attn, ref_attn, atol=1e-4, rtol=1e-4), "attn mismatch"

    print("KERNEL_OK")
</pallas_src>

<mosaic_0001>
module attributes {stable_mosaic.version = 11 : i64} {
  func.func @_qkv_projection_kernel(%arg0: i32, %arg1: memref<16x32xf32, #tpu.memory_space<vmem>>, %arg2: memref<16x32xf32, #tpu.memory_space<vmem>>, %arg3: memref<16x32xf32, #tpu.memory_space<vmem>>, %arg4: memref<32x32xf32, #tpu.memory_space<vmem>>, %arg5: memref<32x32xf32, #tpu.memory_space<vmem>>, %arg6: memref<32x32xf32, #tpu.memory_space<vmem>>, %arg7: memref<1x32xf32, #tpu.memory_space<vmem>>, %arg8: memref<1x32xf32, #tpu.memory_space<vmem>>, %arg9: memref<16x32xf32, #tpu.memory_space<vmem>>, %arg10: memref<16x32xf32, #tpu.memory_space<vmem>>, %arg11: memref<16x32xf32, #tpu.memory_space<vmem>>) attributes {dimension_semantics = [#tpu.dimension_semantics<arbitrary>], iteration_bounds = array<i64: 1>, scalar_prefetch = 0 : i64, scratch_operands = 0 : i64, tpu.core_type = #tpu.core_type<tc>, window_params = [{pipeline_mode = #tpu.pipeline_mode<synchronous>, transform_indices = @transform_0, window_bounds = array<i64: 16, 32>}, {pipeline_mode = #tpu.pipeline_mode<synchronous>, transform_indices = @transform_1, window_bounds = array<i64: 16, 32>}, {pipeline_mode = #tpu.pipeline_mode<synchronous>, transform_indices = @transform_2, window_bounds = array<i64: 16, 32>}, {pipeline_mode = #tpu.pipeline_mode<synchronous>, transform_indices = @transform_3, window_bounds = array<i64: 32, 32>}, {pipeline_mode = #tpu.pipeline_mode<synchronous>, transform_indices = @transform_4, window_bounds = array<i64: 32, 32>}, {pipeline_mode = #tpu.pipeline_mode<synchronous>, transform_indices = @transform_5, window_bounds = array<i64: 32, 32>}, {pipeline_mode = #tpu.pipeline_mode<synchronous>, transform_indices = @transform_6, window_bounds = array<i64: 1, 32>}, {pipeline_mode = #tpu.pipeline_mode<synchronous>, transform_indices = @transform_7, window_bounds = array<i64: 1, 32>}, {pipeline_mode = #tpu.pipeline_mode<synchronous>, transform_indices = @transform_8, window_bounds = array<i64: 16, 32>}, {pipeline_mode = #tpu.pipeline_mode<synchronous>, transform_indices = @transform_9, window_bounds = array<i64: 16, 32>}, {pipeline_mode = #tpu.pipeline_mode<synchronous>, transform_indices = @transform_10, window_bounds = array<i64: 16, 32>}]} {
    %c0 = arith.constant 0 : index
    %c0_0 = arith.constant 0 : index
    %0 = vector.load %arg1[%c0, %c0_0] : memref<16x32xf32, #tpu.memory_space<vmem>>, vector<16x32xf32>
    %c0_1 = arith.constant 0 : index
    %c0_2 = arith.constant 0 : index
    %1 = vector.load %arg2[%c0_1, %c0_2] : memref<16x32xf32, #tpu.memory_space<vmem>>, vector<16x32xf32>
    %c0_3 = arith.constant 0 : index
    %c0_4 = arith.constant 0 : index
    %2 = vector.load %arg3[%c0_3, %c0_4] : memref<16x32xf32, #tpu.memory_space<vmem>>, vector<16x32xf32>
    %c0_5 = arith.constant 0 : index
    %c0_6 = arith.constant 0 : index
    %3 = vector.load %arg4[%c0_5, %c0_6] : memref<32x32xf32, #tpu.memory_space<vmem>>, vector<32x32xf32>
    %cst = arith.constant dense<0.000000e+00> : vector<16x32xf32>
    %4 = tpu.matmul %0, %3, %cst {dimension_numbers = #tpu.dot_dimension_numbers<[1], [0], [0], [1], [0, 0, 1, 1], [], []>} : vector<16x32xf32>, vector<32x32xf32>, vector<16x32xf32> -> vector<16x32xf32>
    %c0_7 = arith.constant 0 : index
    %c0_8 = arith.constant 0 : index
    %5 = vector.load %arg9[%c0_7, %c0_8] : memref<16x32xf32, #tpu.memory_space<vmem>>, vector<16x32xf32>
    tpu.vector_store %arg9[%c0_7, %c0_8], %4 {strides = array<i32>} : memref<16x32xf32, #tpu.memory_space<vmem>>, vector<16x32xf32>,
    %c0_9 = arith.constant 0 : index
    %c0_10 = arith.constant 0 : index
    %6 = vector.load %arg5[%c0_9, %c0_10] : memref<32x32xf32, #tpu.memory_space<vmem>>, vector<32x32xf32>
    %cst_11 = arith.constant dense<0.000000e+00> : vector<16x32xf32>
    %7 = tpu.matmul %1, %6, %cst_11 {dimension_numbers = #tpu.dot_dimension_numbers<[1], [0], [0], [1], [0, 0, 1, 1], [], []>} : vector<16x32xf32>, vector<32x32xf32>, vector<16x32xf32> -> vector<16x32xf32>
    %c0_12 = arith.constant 0 : index
    %c0_13 = arith.constant 0 : index
    %8 = vector.load %arg7[%c0_12, %c0_13] : memref<1x32xf32, #tpu.memory_space<vmem>>, vector<1x32xf32>
    %9 = vector.broadcast %8 : vector<1x32xf32> to vector<16x32xf32>
    %10 = arith.addf %7, %9 : vector<16x32xf32>
    %c0_14 = arith.constant 0 : index
    %c0_15 = arith.constant 0 : index
    %11 = vector.load %arg10[%c0_14, %c0_15] : memref<16x32xf32, #tpu.memory_space<vmem>>, vector<16x32xf32>
    tpu.vector_store %arg10[%c0_14, %c0_15], %10 {strides = array<i32>} : memref<16x32xf32, #tpu.memory_space<vmem>>, vector<16x32xf32>,
    %c0_16 = arith.constant 0 : index
    %c0_17 = arith.constant 0 : index
    %12 = vector.load %arg6[%c0_16, %c0_17] : memref<32x32xf32, #tpu.memory_space<vmem>>, vector<32x32xf32>
    %cst_18 = arith.constant dense<0.000000e+00> : vector<16x32xf32>
    %13 = tpu.matmul %2, %12, %cst_18 {dimension_numbers = #tpu.dot_dimension_numbers<[1], [0], [0], [1], [0, 0, 1, 1], [], []>} : vector<16x32xf32>, vector<32x32xf32>, vector<16x32xf32> -> vector<16x32xf32>
    %c0_19 = arith.constant 0 : index
    %c0_20 = arith.constant 0 : index
    %14 = vector.load %arg8[%c0_19, %c0_20] : memref<1x32xf32, #tpu.memory_space<vmem>>, vector<1x32xf32>
    %15 = vector.broadcast %14 : vector<1x32xf32> to vector<16x32xf32>
    %16 = arith.addf %13, %15 : vector<16x32xf32>
    %c0_21 = arith.constant 0 : index
    %c0_22 = arith.constant 0 : index
    %17 = vector.load %arg11[%c0_21, %c0_22] : memref<16x32xf32, #tpu.memory_space<vmem>>, vector<16x32xf32>
    tpu.vector_store %arg11[%c0_21, %c0_22], %16 {strides = array<i32>} : memref<16x32xf32, #tpu.memory_space<vmem>>, vector<16x32xf32>,
    return
  }
  func.func @transform_0(%arg0: i32) -> (i32, i32) {
    %c0_i32 = arith.constant 0 : i32
    %c0_i32_0 = arith.constant 0 : i32
    %c0_i32_1 = arith.constant 0 : i32
    return %c0_i32, %c0_i32_0 : i32, i32
  }
  func.func @transform_1(%arg0: i32) -> (i32, i32) {
    %c0_i32 = arith.constant 0 : i32
    %c0_i32_0 = arith.constant 0 : i32
    %c0_i32_1 = arith.constant 0 : i32
    return %c0_i32, %c0_i32_0 : i32, i32
  }
  func.func @transform_2(%arg0: i32) -> (i32, i32) {
    %c0_i32 = arith.constant 0 : i32
    %c0_i32_0 = arith.constant 0 : i32
    %c0_i32_1 = arith.constant 0 : i32
    return %c0_i32, %c0_i32_0 : i32, i32
  }
  func.func @transform_3(%arg0: i32) -> (i32, i32) {
    %c0_i32 = arith.constant 0 : i32
    %c0_i32_0 = arith.constant 0 : i32
    %c0_i32_1 = arith.constant 0 : i32
    return %c0_i32, %c0_i32_0 : i32, i32
  }
  func.func @transform_4(%arg0: i32) -> (i32, i32) {
    %c0_i32 = arith.constant 0 : i32
    %c0_i32_0 = arith.constant 0 : i32
    %c0_i32_1 = arith.constant 0 : i32
    return %c0_i32, %c0_i32_0 : i32, i32
  }
  func.func @transform_5(%arg0: i32) -> (i32, i32) {
    %c0_i32 = arith.constant 0 : i32
    %c0_i32_0 = arith.constant 0 : i32
    %c0_i32_1 = arith.constant 0 : i32
    return %c0_i32, %c0_i32_0 : i32, i32
  }
  func.func @transform_6(%arg0: i32) -> (i32, i32) {
    %c0_i32 = arith.constant 0 : i32
    %c0_i32_0 = arith.constant 0 : i32
    %c0_i32_1 = arith.constant 0 : i32
    return %c0_i32, %c0_i32_0 : i32, i32
  }
  func.func @transform_7(%arg0: i32) -> (i32, i32) {
    %c0_i32 = arith.constant 0 : i32
    %c0_i32_0 = arith.constant 0 : i32
    %c0_i32_1 = arith.constant 0 : i32
    return %c0_i32, %c0_i32_0 : i32, i32
  }
  func.func @transform_8(%arg0: i32) -> (i32, i32) {
    %c0_i32 = arith.constant 0 : i32
    %c0_i32_0 = arith.constant 0 : i32
    %c0_i32_1 = arith.constant 0 : i32
    return %c0_i32, %c0_i32_0 : i32, i32
  }
  func.func @transform_9(%arg0: i32) -> (i32, i32) {
    %c0_i32 = arith.constant 0 : i32
    %c0_i32_0 = arith.constant 0 : i32
    %c0_i32_1 = arith.constant 0 : i32
    return %c0_i32, %c0_i32_0 : i32, i32
  }
  func.func @transform_10(%arg0: i32) -> (i32, i32) {
    %c0_i32 = arith.constant 0 : i32
    %c0_i32_0 = arith.constant 0 : i32
    %c0_i32_1 = arith.constant 0 : i32
    return %c0_i32, %c0_i32_0 : i32, i32
  }
}

module attributes {stable_mosaic.version = 11 : i64} {
  func.func @_attention_kernel(%arg0: i32, %arg1: memref<8x8x8xf32, #tpu.memory_space<vmem>>, %arg2: memref<8x8x8xf32, #tpu.memory_space<vmem>>, %arg3: memref<8x8x8xf32, #tpu.memory_space<vmem>>, %arg4: memref<8x8x32xf32, #tpu.memory_space<vmem>>, %arg5: memref<1x32xf32, #tpu.memory_space<vmem>>, %arg6: memref<2x8x32xf32, #tpu.memory_space<vmem>>, %arg7: memref<8x8x8xf32, #tpu.memory_space<vmem>>) attributes {dimension_semantics = [#tpu.dimension_semantics<arbitrary>], iteration_bounds = array<i64: 1>, scalar_prefetch = 0 : i64, scratch_operands = 0 : i64, tpu.core_type = #tpu.core_type<tc>, window_params = [{pipeline_mode = #tpu.pipeline_mode<synchronous>, transform_indices = @transform_0, window_bounds = array<i64: 8, 8, 8>}, {pipeline_mode = #tpu.pipeline_mode<synchronous>, transform_indices = @transform_1, window_bounds = array<i64: 8, 8, 8>}, {pipeline_mode = #tpu.pipeline_mode<synchronous>, transform_indices = @transform_2, window_bounds = array<i64: 8, 8, 8>}, {pipeline_mode = #tpu.pipeline_mode<synchronous>, transform_indices = @transform_3, window_bounds = array<i64: 8, 8, 32>}, {pipeline_mode = #tpu.pipeline_mode<synchronous>, transform_indices = @transform_4, window_bounds = array<i64: 1, 32>}, {pipeline_mode = #tpu.pipeline_mode<synchronous>, transform_indices = @transform_5, window_bounds = array<i64: 2, 8, 32>}, {pipeline_mode = #tpu.pipeline_mode<synchronous>, transform_indices = @transform_6, window_bounds = array<i64: 8, 8, 8>}]} {
    %c0 = arith.constant 0 : index
    %c0_0 = arith.constant 0 : index
    %c0_1 = arith.constant 0 : index
    %0 = vector.load %arg1[%c0, %c0_0, %c0_1] : memref<8x8x8xf32, #tpu.memory_space<vmem>>, vector<8x8x8xf32>
    %c0_2 = arith.constant 0 : index
    %c0_3 = arith.constant 0 : index
    %c0_4 = arith.constant 0 : index
    %1 = vector.load %arg2[%c0_2, %c0_3, %c0_4] : memref<8x8x8xf32, #tpu.memory_space<vmem>>, vector<8x8x8xf32>
    %c0_5 = arith.constant 0 : index
    %c0_6 = arith.constant 0 : index
    %c0_7 = arith.constant 0 : index
    %2 = vector.load %arg3[%c0_5, %c0_6, %c0_7] : memref<8x8x8xf32, #tpu.memory_space<vmem>>, vector<8x8x8xf32>
    "tpu.trace_start"() <{level = 10 : i32, message = "gle,gse->gls"}> : () -> ()
    %cst = arith.constant dense<0.000000e+00> : vector<8x8x8xf32>
    %3 = tpu.matmul %0, %1, %cst {dimension_numbers = #tpu.dot_dimension_numbers<[2], [2], [1], [1], [0, 0, 0, 1, 1, 1], [0], [0]>} : vector<8x8x8xf32>, vector<8x8x8xf32>, vector<8x8x8xf32> -> vector<8x8x8xf32>
    "tpu.trace_stop"() : () -> ()
    %cst_8 = arith.constant 0.353553385 : f32
    %4 = vector.broadcast %cst_8 : f32 to vector<8x8x8xf32>
    %5 = arith.mulf %3, %4 : vector<8x8x8xf32>
    %cst_9 = arith.constant dense<0xFF800000> : vector<8x8xf32>
    %6 = vector.multi_reduction <maximumf>, %5, %cst_9 [2] : vector<8x8x8xf32> to vector<8x8xf32>
    %7 = vector.shape_cast %6 : vector<8x8xf32> to vector<8x8x1xf32>
    %8 = vector.broadcast %7 : vector<8x8x1xf32> to vector<8x8x8xf32>
    %9 = arith.subf %5, %8 : vector<8x8x8xf32>
    %10 = math.exp %9 : vector<8x8x8xf32>
    %cst_10 = arith.constant dense<0.000000e+00> : vector<8x8xf32>
    %11 = vector.multi_reduction <add>, %10, %cst_10 [2] : vector<8x8x8xf32> to vector<8x8xf32>
    %12 = vector.shape_cast %11 : vector<8x8xf32> to vector<8x8x1xf32>
    %13 = tpu.reciprocal %12 {approx = true} : vector<8x8x1xf32> -> vector<8x8x1xf32>
    %14 = arith.mulf %12, %13 : vector<8x8x1xf32>
    %cst_11 = arith.constant 2.000000e+00 : f32
    %15 = vector.broadcast %cst_11 : f32 to vector<8x8x1xf32>
    %16 = arith.subf %15, %14 : vector<8x8x1xf32>
    %17 = arith.mulf %13, %16 : vector<8x8x1xf32>
    %18 = vector.broadcast %17 : vector<8x8x1xf32> to vector<8x8x8xf32>
    %19 = arith.mulf %10, %18 : vector<8x8x8xf32>
    %c0_12 = arith.constant 0 : index
    %c0_13 = arith.constant 0 : index
    %c0_14 = arith.constant 0 : index
    %20 = vector.load %arg7[%c0_12, %c0_13, %c0_14] : memref<8x8x8xf32, #tpu.memory_space<vmem>>, vector<8x8x8xf32>
    tpu.vector_store %arg7[%c0_12, %c0_13, %c0_14], %19 {strides = array<i32>} : memref<8x8x8xf32, #tpu.memory_space<vmem>>, vector<8x8x8xf32>,
    "tpu.trace_start"() <{level = 10 : i32, message = "gls,gse->gle"}> : () -> ()
    %cst_15 = arith.constant dense<0.000000e+00> : vector<8x8x8xf32>
    %21 = tpu.matmul %19, %2, %cst_15 {dimension_numbers = #tpu.dot_dimension_numbers<[2], [1], [1], [2], [0, 0, 0, 1, 1, 2], [0], [0]>} : vector<8x8x8xf32>, vector<8x8x8xf32>, vector<8x8x8xf32> -> vector<8x8x8xf32>
    "tpu.trace_stop"() : () -> ()
    %c0_16 = arith.constant 0 : index
    %c0_17 = arith.constant 0 : index
    %c0_18 = arith.constant 0 : index
    %22 = vector.load %arg4[%c0_16, %c0_17, %c0_18] : memref<8x8x32xf32, #tpu.memory_space<vmem>>, vector<8x8x32xf32>
    "tpu.trace_start"() <{level = 10 : i32, message = "gle,ged->gld"}> : () -> ()
    %cst_19 = arith.constant dense<0.000000e+00> : vector<8x8x32xf32>
    %23 = tpu.matmul %21, %22, %cst_19 {dimension_numbers = #tpu.dot_dimension_numbers<[2], [1], [1], [2], [0, 0, 0, 1, 1, 2], [0], [0]>} : vector<8x8x8xf32>, vector<8x8x32xf32>, vector<8x8x32xf32> -> vector<8x8x32xf32>
    "tpu.trace_stop"() : () -> ()
    %24 = vector.shape_cast %23 : vector<8x8x32xf32> to vector<2x4x8x32xf32>
    %cst_20 = arith.constant dense<0.000000e+00> : vector<2x8x32xf32>
    %25 = vector.multi_reduction <add>, %24, %cst_20 [1] : vector<2x4x8x32xf32> to vector<2x8x32xf32>
    %c0_21 = arith.constant 0 : index
    %c0_22 = arith.constant 0 : index
    %26 = vector.load %arg5[%c0_21, %c0_22] : memref<1x32xf32, #tpu.memory_space<vmem>>, vector<1x32xf32>
    %27 = vector.shape_cast %26 : vector<1x32xf32> to vector<1x1x32xf32>
    %28 = vector.broadcast %27 : vector<1x1x32xf32> to vector<2x8x32xf32>
    %29 = arith.addf %25, %28 : vector<2x8x32xf32>
    %c0_23 = arith.constant 0 : index
    %c0_24 = arith.constant 0 : index
    %c0_25 = arith.constant 0 : index
    %30 = vector.load %arg6[%c0_23, %c0_24, %c0_25] : memref<2x8x32xf32, #tpu.memory_space<vmem>>, vector<2x8x32xf32>
    tpu.vector_store %arg6[%c0_23, %c0_24, %c0_25], %29 {strides = array<i32>} : memref<2x8x32xf32, #tpu.memory_space<vmem>>, vector<2x8x32xf32>,
    return
  }
  func.func @transform_0(%arg0: i32) -> (i32, i32, i32) {
    %c0_i32 = arith.constant 0 : i32
    %c0_i32_0 = arith.constant 0 : i32
    %c0_i32_1 = arith.constant 0 : i32
    %c0_i32_2 = arith.constant 0 : i32
    return %c0_i32, %c0_i32_0, %c0_i32_1 : i32, i32, i32
  }
  func.func @transform_1(%arg0: i32) -> (i32, i32, i32) {
    %c0_i32 = arith.constant 0 : i32
    %c0_i32_0 = arith.constant 0 : i32
    %c0_i32_1 = arith.constant 0 : i32
    %c0_i32_2 = arith.constant 0 : i32
    return %c0_i32, %c0_i32_0, %c0_i32_1 : i32, i32, i32
  }
  func.func @transform_2(%arg0: i32) -> (i32, i32, i32) {
    %c0_i32 = arith.constant 0 : i32
    %c0_i32_0 = arith.constant 0 : i32
    %c0_i32_1 = arith.constant 0 : i32
    %c0_i32_2 = arith.constant 0 : i32
    return %c0_i32, %c0_i32_0, %c0_i32_1 : i32, i32, i32
  }
  func.func @transform_3(%arg0: i32) -> (i32, i32, i32) {
    %c0_i32 = arith.constant 0 : i32
    %c0_i32_0 = arith.constant 0 : i32
    %c0_i32_1 = arith.constant 0 : i32
    %c0_i32_2 = arith.constant 0 : i32
    return %c0_i32, %c0_i32_0, %c0_i32_1 : i32, i32, i32
  }
  func.func @transform_4(%arg0: i32) -> (i32, i32) {
    %c0_i32 = arith.constant 0 : i32
    %c0_i32_0 = arith.constant 0 : i32
    %c0_i32_1 = arith.constant 0 : i32
    return %c0_i32, %c0_i32_0 : i32, i32
  }
  func.func @transform_5(%arg0: i32) -> (i32, i32, i32) {
    %c0_i32 = arith.constant 0 : i32
    %c0_i32_0 = arith.constant 0 : i32
    %c0_i32_1 = arith.constant 0 : i32
    %c0_i32_2 = arith.constant 0 : i32
    return %c0_i32, %c0_i32_0, %c0_i32_1 : i32, i32, i32
  }
  func.func @transform_6(%arg0: i32) -> (i32, i32, i32) {
    %c0_i32 = arith.constant 0 : i32
    %c0_i32_0 = arith.constant 0 : i32
    %c0_i32_1 = arith.constant 0 : i32
    %c0_i32_2 = arith.constant 0 : i32
    return %c0_i32, %c0_i32_0, %c0_i32_1 : i32, i32, i32
  }
}

</mosaic_0001>

<llo_original>
// kernel: attention_layer.2
$region0: #{attention_layer.2}
  #allocation0 [shape = 'u32[]', space=smem, size = 0x4, offset = 0x4, fixed_abs, tag = 'smem constant byte address 0x4 - core index']
  #allocation1 [shape = 'u32[144,128]{1,0:T(1,128)}', space=vmem, size = 0x12000, scoped, tag = 'internal scratch']
  %s0 = inlined_call_operand.vmem [shape: f32[16,32], index: 0, kind: input, shape index: {}]
  %s1 = inlined_call_operand.vmem [shape: f32[16,32], index: 1, kind: input, shape index: {}]
  %s2 = inlined_call_operand.vmem [shape: f32[16,32], index: 2, kind: input, shape index: {}]
  %s3 = inlined_call_operand.vmem [shape: f32[32,32], index: 3, kind: input, shape index: {}]
  %s4 = inlined_call_operand.vmem [shape: f32[32,32], index: 4, kind: input, shape index: {}]
  %s5 = inlined_call_operand.vmem [shape: f32[32,32], index: 5, kind: input, shape index: {}]
  %s6 = inlined_call_operand.vmem [shape: f32[1,32], index: 6, kind: input, shape index: {}]
  %s7 = inlined_call_operand.vmem [shape: f32[1,32], index: 7, kind: input, shape index: {}]
  %s8 = inlined_call_operand.vmem [shape: f32[16,32], index: 8, kind: output, shape index: {0}]
  %s9 = inlined_call_operand.vmem [shape: f32[16,32], index: 9, kind: output, shape index: {1}]
  %s10 = inlined_call_operand.vmem [shape: f32[16,32], index: 10, kind: output, shape index: {2}]
  %11 = xla_tuple %s8, %s9, %s10
  %s12 = sld [smem:[#allocation0]]
  $region58: #{attention_layer.2} parent=0
    _
  %s14 = ssub.s32 1, %s12
  %s15 = scalar_select 0, %s14, %s12
  // Predicated region
  $region2: #{attention_layer.2} parent=0 // pred_check
    _
  $region3: #{attention_layer.2} parent=0 // pred_check_branch
    %17 = sbr.rel (0) target = $region5
  $region4: #{attention_layer.2} parent=0 // pred_region
    _
  $region5: #{attention_layer.2} parent=0 // pred_fallthru
    _
  // Predicated region
  $region6: #{attention_layer.2} parent=0 // pred_check
    _
  $region7: #{attention_layer.2} parent=0 // pred_check_branch
    %19 = sbr.rel (0) target = $region9
  $region8: #{attention_layer.2} parent=0 // pred_region
    _
  $region9: #{attention_layer.2} parent=0 // pred_fallthru
    _
  // Predicated region
  $region10: #{attention_layer.2} parent=0 // pred_check
    _
  $region11: #{attention_layer.2} parent=0 // pred_check_branch
    %21 = sbr.rel (0) target = $region13
  $region12: #{attention_layer.2} parent=0 // pred_region
    _
  $region13: #{attention_layer.2} parent=0 // pred_fallthru
    _
  // Predicated region
  $region14: #{attention_layer.2} parent=0 // pred_check
    _
  $region15: #{attention_layer.2} parent=0 // pred_check_branch
    %23 = sbr.rel (0) target = $region17
  $region16: #{attention_layer.2} parent=0 // pred_region
    _
  $region17: #{attention_layer.2} parent=0 // pred_fallthru
    _
  // Predicated region
  $region18: #{attention_layer.2} parent=0 // pred_check
    _
  $region19: #{attention_layer.2} parent=0 // pred_check_branch
    %25 = sbr.rel (0) target = $region21
  $region20: #{attention_layer.2} parent=0 // pred_region
    _
  $region21: #{attention_layer.2} parent=0 // pred_fallthru
    _
  // Predicated region
  $region22: #{attention_layer.2} parent=0 // pred_check
    _
  $region23: #{attention_layer.2} parent=0 // pred_check_branch
    %27 = sbr.rel (0) target = $region25
  $region24: #{attention_layer.2} parent=0 // pred_region
    _
  $region25: #{attention_layer.2} parent=0 // pred_fallthru
    _
  // Predicated region
  $region26: #{attention_layer.2} parent=0 // pred_check
    _
  $region27: #{attention_layer.2} parent=0 // pred_check_branch
    %29 = sbr.rel (0) target = $region29
  $region28: #{attention_layer.2} parent=0 // pred_region
    _
  $region29: #{attention_layer.2} parent=0 // pred_fallthru
    _
  // Predicated region
  $region30: #{attention_layer.2} parent=0 // pred_check
    _
  $region31: #{attention_layer.2} parent=0 // pred_check_branch
    %31 = sbr.rel (0) target = $region33
  $region32: #{attention_layer.2} parent=0 // pred_region
    _
  $region33: #{attention_layer.2} parent=0 // pred_fallthru
    _
  %v32 = vld [vmem:[%s0] sm:$0xff]
  %v33 = vld [vmem:[%s0 + $0x8] sm:$0xff]
  %v34 = vld [vmem:[%s1] sm:$0xff]
  %v35 = vld [vmem:[%s1 + $0x8] sm:$0xff]
  %v36 = vld [vmem:[%s2] sm:$0xff]
  %v37 = vld [vmem:[%s2 + $0x8] sm:$0xff]
  %v38 = vld [vmem:[%s3] sm:$0xff]
  %v39 = vld [vmem:[%s3 + $0x8] sm:$0xff]
  %v40 = vld [vmem:[%s3 + $0x10] sm:$0xff]
  %v41 = vld [vmem:[%s3 + $0x18] sm:$0xff]
  %vm42 = vcmask 261120
  %v44 = vsel %vm42, %v32, 0
  %v47 = vsel %vm42, %v33, 0
  %49 = vmatprep.subr.mxu0 0.0
  %50 = vmatpush1.msra.mxu0 %v38
  %51 = vmatprep.subr.mxu0 0.0
  %52 = vmatpush1.msra.mxu0 %v39
  %53 = vmatprep.subr.mxu0 0.0
  %54 = vmatpush1.msra.mxu0 %v40
  %55 = vmatprep.subr.mxu0 0.0
  %56 = vmatpush1.msra.mxu0 %v41
  %57 = vmatprep.subr.mxu0 0.0
  %58 = vmatpush1.msra.mxu0 0.0
  %59 = vmatprep.subr.mxu0 0.0
  %60 = vmatpush1.msra.mxu0 0.0
  %61 = vmatprep.subr.mxu0 0.0
  %62 = vmatpush1.msra.mxu0 0.0
  %63 = vmatprep.subr.mxu0 0.0
  %64 = vmatpush1.msra.mxu0 0.0
  %65 = vmatprep.subr.mxu0 0.0
  %66 = vmatpush1.msra.mxu0 0.0
  %67 = vmatprep.subr.mxu0 0.0
  %68 = vmatpush1.msra.mxu0 0.0
  %69 = vmatprep.subr.mxu0 0.0
  %70 = vmatpush1.msra.mxu0 0.0
  %71 = vmatprep.subr.mxu0 0.0
  %72 = vmatpush1.msra.mxu0 0.0
  %73 = vmatprep.subr.mxu0 0.0
  %74 = vmatpush1.msra.mxu0 0.0
  %75 = vmatprep.subr.mxu0 0.0
  %76 = vmatpush1.msra.mxu0 0.0
  %77 = vmatprep.subr.mxu0 0.0
  %78 = vmatpush1.msra.mxu0 0.0
  %79 = vmatprep.subr.mxu0 0.0
  %80 = vmatpush1.msra.mxu0 0.0
  %81 = vmatprep.subr.mxu0 0.0
  %82 = vmatpush1.msra.mxu0 0.0
  %83 = vmatprep.subr.mxu0 0.0
  %84 = vmatpush1.msra.mxu0 0.0
  %85 = vmatprep.subr.mxu0 0.0
  %86 = vmatpush1.msra.mxu0 0.0
  %87 = vmatprep.subr.mxu0 0.0
  %88 = vmatpush1.msra.mxu0 0.0
  %89 = vmatprep.subr.mxu0 0.0
  %90 = vmatpush1.msra.mxu0 0.0
  %91 = vmatprep.subr.mxu0 0.0
  %92 = vmatpush1.msra.mxu0 0.0
  %93 = vmatprep.subr.mxu0 0.0
  %94 = vmatpush1.msra.mxu0 0.0
  %95 = vmatprep.subr.mxu0 0.0
  %96 = vmatpush1.msra.mxu0 0.0
  %97 = vmatprep.subr.mxu0 0.0
  %98 = vmatpush1.msra.mxu0 0.0
  %99 = vmatprep.subr.mxu0 0.0
  %100 = vmatpush1.msra.mxu0 0.0
  %101 = vmatprep.subr.mxu0 0.0
  %102 = vmatpush1.msra.mxu0 0.0
  %103 = vmatprep.subr.mxu0 0.0
  %104 = vmatpush1.msra.mxu0 0.0
  %105 = vmatprep.subr.mxu0 0.0
  %106 = vmatpush1.msra.mxu0 0.0
  %107 = vmatprep.subr.mxu0 0.0
  %108 = vmatpush1.msra.mxu0 0.0
  %109 = vmatprep.subr.mxu0 0.0
  %110 = vmatpush1.msra.mxu0 0.0
  %111 = vmatprep.subr.mxu0 0.0
  %112 = vmatpush1.msra.mxu0 0.0
  %113 = vmatprep.mubr.f32.mxu0 0.0
  %114 = vmatmul.mubr.f32.gmra.mrb[0].mxu0 %v44
  %v115 = vpop.f32.mrb[0].mxu0
  %v116 = vadd.f32 0.0, %v115
  %v117 = vpop.f32.mrb[0].mxu0
  %118 = vmatprep.mubr.f32.mxu0 0.0
  %119 = vmatmul.mubr.f32.gmra.mrb[0].mxu0 %v47
  %v120 = vpop.f32.mrb[0].mxu0
  %v121 = vadd.f32 0.0, %v120
  %v122 = vpop.f32.mrb[0].mxu0
  %123 = vdwg.mxu0
  %124 = vst.msk [vmem:[%s8] sm:$0xff] %vm42, %v116
  %125 = vst.msk [vmem:[%s8 + $0x8] sm:$0xff] %vm42, %v121
  %v126 = vld [vmem:[%s4] sm:$0xff]
  %v127 = vld [vmem:[%s4 + $0x8] sm:$0xff]
  %v128 = vld [vmem:[%s4 + $0x10] sm:$0xff]
  %v129 = vld [vmem:[%s4 + $0x18] sm:$0xff]
  %v130 = vld [vmem:[%s6] sm:$0x1]
  %v132 = vlaneseq
  %v133 = vshrl.u32 %v132, 7
  %v134 = vsub.s32 0, %v133
  %v135 = vrot.slane %v130, %v134
  %v138 = vsel %vm42, %v34, 0
  %v141 = vsel %vm42, %v35, 0
  %143 = vmatprep.subr.mxu0 0.0
  %144 = vmatpush1.msra.mxu0 %v126
  %145 = vmatprep.subr.mxu0 0.0
  %146 = vmatpush1.msra.mxu0 %v127
  %147 = vmatprep.subr.mxu0 0.0
  %148 = vmatpush1.msra.mxu0 %v128
  %149 = vmatprep.subr.mxu0 0.0
  %150 = vmatpush1.msra.mxu0 %v129
  %151 = vmatprep.subr.mxu0 0.0
  %152 = vmatpush1.msra.mxu0 0.0
  %153 = vmatprep.subr.mxu0 0.0
  %154 = vmatpush1.msra.mxu0 0.0
  %155 = vmatprep.subr.mxu0 0.0
  %156 = vmatpush1.msra.mxu0 0.0
  %157 = vmatprep.subr.mxu0 0.0
  %158 = vmatpush1.msra.mxu0 0.0
  %159 = vmatprep.subr.mxu0 0.0
  %160 = vmatpush1.msra.mxu0 0.0
  %161 = vmatprep.subr.mxu0 0.0
  %162 = vmatpush1.msra.mxu0 0.0
  %163 = vmatprep.subr.mxu0 0.0
  %164 = vmatpush1.msra.mxu0 0.0
  %165 = vmatprep.subr.mxu0 0.0
  %166 = vmatpush1.msra.mxu0 0.0
  %167 = vmatprep.subr.mxu0 0.0
  %168 = vmatpush1.msra.mxu0 0.0
  %169 = vmatprep.subr.mxu0 0.0
  %170 = vmatpush1.msra.mxu0 0.0
  %171 = vmatprep.subr.mxu0 0.0
  %172 = vmatpush1.msra.mxu0 0.0
  %173 = vmatprep.subr.mxu0 0.0
  %174 = vmatpush1.msra.mxu0 0.0
  %175 = vmatprep.subr.mxu0 0.0
  %176 = vmatpush1.msra.mxu0 0.0
  %177 = vmatprep.subr.mxu0 0.0
  %178 = vmatpush1.msra.mxu0 0.0
  %179 = vmatprep.subr.mxu0 0.0
  %180 = vmatpush1.msra.mxu0 0.0
  %181 = vmatprep.subr.mxu0 0.0
  %182 = vmatpush1.msra.mxu0 0.0
  %183 = vmatprep.subr.mxu0 0.0
  %184 = vmatpush1.msra.mxu0 0.0
  %185 = vmatprep.subr.mxu0 0.0
  %186 = vmatpush1.msra.mxu0 0.0
  %187 = vmatprep.subr.mxu0 0.0
  %188 = vmatpush1.msra.mxu0 0.0
  %189 = vmatprep.subr.mxu0 0.0
  %190 = vmatpush1.msra.mxu0 0.0
  %191 = vmatprep.subr.mxu0 0.0
  %192 = vmatpush1.msra.mxu0 0.0
  %193 = vmatprep.subr.mxu0 0.0
  %194 = vmatpush1.msra.mxu0 0.0
  %195 = vmatprep.subr.mxu0 0.0
  %196 = vmatpush1.msra.mxu0 0.0
  %197 = vmatprep.subr.mxu0 0.0
  %198 = vmatpush1.msra.mxu0 0.0
  %199 = vmatprep.subr.mxu0 0.0
  %200 = vmatpush1.msra.mxu0 0.0
  %201 = vmatprep.subr.mxu0 0.0
  %202 = vmatpush1.msra.mxu0 0.0
  %203 = vmatprep.subr.mxu0 0.0
  %204 = vmatpush1.msra.mxu0 0.0
  %205 = vmatprep.subr.mxu0 0.0
  %206 = vmatpush1.msra.mxu0 0.0
  %207 = vmatprep.mubr.f32.mxu0 0.0
  %208 = vmatmul.mubr.f32.gmra.mrb[0].mxu0 %v138
  %v209 = vpop.f32.mrb[0].mxu0
  %v210 = vadd.f32 %v135, %v209
  %v211 = vpop.f32.mrb[0].mxu0
  %212 = vmatprep.mubr.f32.mxu0 0.0
  %213 = vmatmul.mubr.f32.gmra.mrb[0].mxu0 %v141
  %v214 = vpop.f32.mrb[0].mxu0
  %v215 = vadd.f32 %v135, %v214
  %v216 = vpop.f32.mrb[0].mxu0
  %217 = vdwg.mxu0
  %218 = vst.msk [vmem:[%s9] sm:$0xff] %vm42, %v210
  %219 = vst.msk [vmem:[%s9 + $0x8] sm:$0xff] %vm42, %v215
  %v220 = vld [vmem:[%s5] sm:$0xff]
  %v221 = vld [vmem:[%s5 + $0x8] sm:$0xff]
  %v222 = vld [vmem:[%s5 + $0x10] sm:$0xff]
  %v223 = vld [vmem:[%s5 + $0x18] sm:$0xff]
  %v224 = vld [vmem:[%s7] sm:$0x1]
  %v226 = vlaneseq
  %v227 = vshrl.u32 %v226, 7
  %v228 = vsub.s32 0, %v227
  %v229 = vrot.slane %v224, %v228
  %v232 = vsel %vm42, %v36, 0
  %v235 = vsel %vm42, %v37, 0
  %237 = vmatprep.subr.mxu0 0.0
  %238 = vmatpush1.msra.mxu0 %v220
  %239 = vmatprep.subr.mxu0 0.0
  %240 = vmatpush1.msra.mxu0 %v221
  %241 = vmatprep.subr.mxu0 0.0
  %242 = vmatpush1.msra.mxu0 %v222
  %243 = vmatprep.subr.mxu0 0.0
  %244 = vmatpush1.msra.mxu0 %v223
  %245 = vmatprep.subr.mxu0 0.0
  %246 = vmatpush1.msra.mxu0 0.0
  %247 = vmatprep.subr.mxu0 0.0
  %248 = vmatpush1.msra.mxu0 0.0
  %249 = vmatprep.subr.mxu0 0.0
  %250 = vmatpush1.msra.mxu0 0.0
  %251 = vmatprep.subr.mxu0 0.0
  %252 = vmatpush1.msra.mxu0 0.0
  %253 = vmatprep.subr.mxu0 0.0
  %254 = vmatpush1.msra.mxu0 0.0
  %255 = vmatprep.subr.mxu0 0.0
  %256 = vmatpush1.msra.mxu0 0.0
  %257 = vmatprep.subr.mxu0 0.0
  %258 = vmatpush1.msra.mxu0 0.0
  %259 = vmatprep.subr.mxu0 0.0
  %260 = vmatpush1.msra.mxu0 0.0
  %261 = vmatprep.subr.mxu0 0.0
  %262 = vmatpush1.msra.mxu0 0.0
  %263 = vmatprep.subr.mxu0 0.0
  %264 = vmatpush1.msra.mxu0 0.0
  %265 = vmatprep.subr.mxu0 0.0
  %266 = vmatpush1.msra.mxu0 0.0
  %267 = vmatprep.subr.mxu0 0.0
  %268 = vmatpush1.msra.mxu0 0.0
  %269 = vmatprep.subr.mxu0 0.0
  %270 = vmatpush1.msra.mxu0 0.0
  %271 = vmatprep.subr.mxu0 0.0
  %272 = vmatpush1.msra.mxu0 0.0
  %273 = vmatprep.subr.mxu0 0.0
  %274 = vmatpush1.msra.mxu0 0.0
  %275 = vmatprep.subr.mxu0 0.0
  %276 = vmatpush1.msra.mxu0 0.0
  %277 = vmatprep.subr.mxu0 0.0
  %278 = vmatpush1.msra.mxu0 0.0
  %279 = vmatprep.subr.mxu0 0.0
  %280 = vmatpush1.msra.mxu0 0.0
  %281 = vmatprep.subr.mxu0 0.0
  %282 = vmatpush1.msra.mxu0 0.0
  %283 = vmatprep.subr.mxu0 0.0
  %284 = vmatpush1.msra.mxu0 0.0
  %285 = vmatprep.subr.mxu0 0.0
  %286 = vmatpush1.msra.mxu0 0.0
  %287 = vmatprep.subr.mxu0 0.0
  %288 = vmatpush1.msra.mxu0 0.0
  %289 = vmatprep.subr.mxu0 0.0
  %290 = vmatpush1.msra.mxu0 0.0
  %291 = vmatprep.subr.mxu0 0.0
  %292 = vmatpush1.msra.mxu0 0.0
  %293 = vmatprep.subr.mxu0 0.0
  %294 = vmatpush1.msra.mxu0 0.0
  %295 = vmatprep.subr.mxu0 0.0
  %296 = vmatpush1.msra.mxu0 0.0
  %297 = vmatprep.subr.mxu0 0.0
  %298 = vmatpush1.msra.mxu0 0.0
  %299 = vmatprep.subr.mxu0 0.0
  %300 = vmatpush1.msra.mxu0 0.0
  %301 = vmatprep.mubr.f32.mxu0 0.0
  %302 = vmatmul.mubr.f32.gmra.mrb[0].mxu0 %v232
  %v303 = vpop.f32.mrb[0].mxu0
  %v304 = vadd.f32 %v229, %v303
  %v305 = vpop.f32.mrb[0].mxu0
  %306 = vmatprep.mubr.f32.mxu0 0.0
  %307 = vmatmul.mubr.f32.gmra.mrb[0].mxu0 %v235
  %v308 = vpop.f32.mrb[0].mxu0
  %v309 = vadd.f32 %v229, %v308
  %v310 = vpop.f32.mrb[0].mxu0
  %311 = vdwg.mxu0
  %312 = vst.msk [vmem:[%s10] sm:$0xff] %vm42, %v304
  %313 = vst.msk [vmem:[%s10 + $0x8] sm:$0xff] %vm42, %v309
  // Predicated region
  $region34: #{attention_layer.2} parent=0 // pred_check
    _
  $region35: #{attention_layer.2} parent=0 // pred_check_branch
    %315 = sbr.rel (0) target = $region37
  $region36: #{attention_layer.2} parent=0 // pred_region
    _
  $region37: #{attention_layer.2} parent=0 // pred_fallthru
    _
  // Predicated region
  $region38: #{attention_layer.2} parent=0 // pred_check
    _
  $region39: #{attention_layer.2} parent=0 // pred_check_branch
    %317 = sbr.rel (0) target = $region41
  $region40: #{attention_layer.2} parent=0 // pred_region
    _
  $region41: #{attention_layer.2} parent=0 // pred_fallthru
    _
  // Predicated region
  $region42: #{attention_layer.2} parent=0 // pred_check
    _
  $region43: #{attention_layer.2} parent=0 // pred_check_branch
    %319 = sbr.rel (0) target = $region45
  $region44: #{attention_layer.2} parent=0 // pred_region
    _
  $region45: #{attention_layer.2} parent=0 // pred_fallthru
    _
  // Predicated region
  $region46: #{attention_layer.2} parent=0 // pred_check
    _
  $region47: #{attention_layer.2} parent=0 // pred_check_branch
    %321 = sbr.rel (0) target = $region49
  $region48: #{attention_layer.2} parent=0 // pred_region
    _
  $region49: #{attention_layer.2} parent=0 // pred_fallthru
    _
  // Predicated region
  $region50: #{attention_layer.2} parent=0 // pred_check
    _
  $region51: #{attention_layer.2} parent=0 // pred_check_branch
    %323 = sbr.rel (0) target = $region53
  $region52: #{attention_layer.2} parent=0 // pred_region
    _
  $region53: #{attention_layer.2} parent=0 // pred_fallthru
    _
  // Predicated region
  $region54: #{attention_layer.2} parent=0 // pred_check
    _
  $region55: #{attention_layer.2} parent=0 // pred_check_branch
    %325 = sbr.rel (0) target = $region57
  $region56: #{attention_layer.2} parent=0 // pred_region
    _
  $region57: #{attention_layer.2} parent=0 // pred_fallthru
    _

// kernel: attention_layer.3
$region0: #{attention_layer.3}
  #allocation0 [shape = 'u32[]', space=smem, size = 0x4, offset = 0x4, fixed_abs, tag = 'smem constant byte address 0x4 - core index']
  #allocation1 [shape = 'u32[144,128]{1,0:T(1,128)}', space=vmem, size = 0x12000, scoped, tag = 'internal scratch']
  %s0 = inlined_call_operand.vmem [shape: f32[8,8,8], index: 0, kind: input, shape index: {}]
  %s1 = inlined_call_operand.vmem [shape: f32[8,8,8], index: 1, kind: input, shape index: {}]
  %s2 = inlined_call_operand.vmem [shape: f32[8,8,8], index: 2, kind: input, shape index: {}]
  %s3 = inlined_call_operand.vmem [shape: f32[8,8,32], index: 3, kind: input, shape index: {}]
  %s4 = inlined_call_operand.vmem [shape: f32[1,32], index: 4, kind: input, shape index: {}]
  %s5 = inlined_call_operand.hbm [shape: f32[2,8,32], index: 5, kind: output, shape index: {0}]
  %s6 = inlined_call_operand.hbm [shape: f32[8,8,8], index: 6, kind: output, shape index: {1}]
  %7 = xla_tuple %s5, %s6
  %s8 = sld [smem:[#allocation0]]
  $region38: #{attention_layer.3} parent=0
    _
  %s10 = ssub.s32 1, %s8
  %s11 = scalar_select 0, %s10, %s8
  $region1: #{attention_layer.3} parent=0
    #allocation2 [shape = 'u8[8192]{0}', space=vmem, size = 0x2000, scoped, tag = 'output window, operand 0, single buffered']
    #allocation3 [shape = 's32[1]{0}', space=sflag, size = 0x4, scoped, tag = 'scoped memory for attention_layer.3']
    #allocation4 [shape = 'u8[32768]{0}', space=vmem, size = 0x8000, scoped, tag = 'output window, operand 1, single buffered']
    #allocation5 [shape = 's32[1]{0}', space=sflag, size = 0x4, scoped, tag = 'scoped memory for attention_layer.3']
    %12 = vsyncpa [#allocation3], 0
    %13 = vsyncpa [#allocation5], 0
    // Predicated region
    $region2: #{attention_layer.3} parent=1 // pred_check
      _
    $region3: #{attention_layer.3} parent=1 // pred_check_branch
      %15 = sbr.rel (0) target = $region5
    $region4: #{attention_layer.3} parent=1 // pred_region
      _
    $region5: #{attention_layer.3} parent=1 // pred_fallthru
      _
    // Predicated region
    $region6: #{attention_layer.3} parent=1 // pred_check
      _
    $region7: #{attention_layer.3} parent=1 // pred_check_branch
      %17 = sbr.rel (0) target = $region9
    $region8: #{attention_layer.3} parent=1 // pred_region
      _
    $region9: #{attention_layer.3} parent=1 // pred_fallthru
      _
    // Predicated region
    $region10: #{attention_layer.3} parent=1 // pred_check
      _
    $region11: #{attention_layer.3} parent=1 // pred_check_branch
      %19 = sbr.rel (0) target = $region13
    $region12: #{attention_layer.3} parent=1 // pred_region
      _
    $region13: #{attention_layer.3} parent=1 // pred_fallthru
      _
    // Predicated region
    $region14: #{attention_layer.3} parent=1 // pred_check
      _
    $region15: #{attention_layer.3} parent=1 // pred_check_branch
      %21 = sbr.rel (0) target = $region17
    $region16: #{attention_layer.3} parent=1 // pred_region
      _
    $region17: #{attention_layer.3} parent=1 // pred_fallthru
      _
    // Predicated region
    $region18: #{attention_layer.3} parent=1 // pred_check
      _
    $region19: #{attention_layer.3} parent=1 // pred_check_branch
      %23 = sbr.rel (0) target = $region21
    $region20: #{attention_layer.3} parent=1 // pred_region
      _
    $region21: #{attention_layer.3} parent=1 // pred_fallthru
      _
    %v24 = vld [vmem:[%s0] sm:$0xff]
    %v25 = vld [vmem:[%s0 + $0x8] sm:$0xff]
    %v26 = vld [vmem:[%s0 + $0x10] sm:$0xff]
    %v27 = vld [vmem:[%s0 + $0x18] sm:$0xff]
    %v28 = vld [vmem:[%s0 + $0x20] sm:$0xff]
    %v29 = vld [vmem:[%s0 + $0x28] sm:$0xff]
    %v30 = vld [vmem:[%s0 + $0x30] sm:$0xff]
    %v31 = vld [vmem:[%s0 + $0x38] sm:$0xff]
    %v32 = vld [vmem:[%s1] sm:$0xff]
    %v33 = vld [vmem:[%s1 + $0x8] sm:$0xff]
    %v34 = vld [vmem:[%s1 + $0x10] sm:$0xff]
    %v35 = vld [vmem:[%s1 + $0x18] sm:$0xff]
    %v36 = vld [vmem:[%s1 + $0x20] sm:$0xff]
    %v37 = vld [vmem:[%s1 + $0x28] sm:$0xff]
    %v38 = vld [vmem:[%s1 + $0x30] sm:$0xff]
    %v39 = vld [vmem:[%s1 + $0x38] sm:$0xff]
    %v40 = vld [vmem:[%s2] sm:$0xff]
    %v41 = vld [vmem:[%s2 + $0x8] sm:$0xff]
    %v42 = vld [vmem:[%s2 + $0x10] sm:$0xff]
    %v43 = vld [vmem:[%s2 + $0x18] sm:$0xff]
    %v44 = vld [vmem:[%s2 + $0x20] sm:$0xff]
    %v45 = vld [vmem:[%s2 + $0x28] sm:$0xff]
    %v46 = vld [vmem:[%s2 + $0x30] sm:$0xff]
    %v47 = vld [vmem:[%s2 + $0x38] sm:$0xff]
    %vm48 = vcmask 64512
    %v50 = vsel %vm48, %v24, 0
    %v53 = vsel %vm48, %v32, 0
    %55 = vmatprep.subr.mxu0 0.0
    %56 = vmatpush1.xpose.msra.mxu0 %v53
    %57 = vmatprep.subr.mxu0 0.0
    %58 = vmatpush1.xpose.msra.mxu0 0.0
    %59 = vmatprep.subr.mxu0 0.0
    %60 = vmatpush1.xpose.msra.mxu0 0.0
    %61 = vmatprep.subr.mxu0 0.0
    %62 = vmatpush1.xpose.msra.mxu0 0.0
    %63 = vmatprep.subr.mxu0 0.0
    %64 = vmatpush1.xpose.msra.mxu0 0.0
    %65 = vmatprep.subr.mxu0 0.0
    %66 = vmatpush1.xpose.msra.mxu0 0.0
    %67 = vmatprep.subr.mxu0 0.0
    %68 = vmatpush1.xpose.msra.mxu0 0.0
    %69 = vmatprep.subr.mxu0 0.0
    %70 = vmatpush1.xpose.msra.mxu0 0.0
    %71 = vmatprep.subr.mxu0 0.0
    %72 = vmatpush1.xpose.msra.mxu0 0.0
    %73 = vmatprep.subr.mxu0 0.0
    %74 = vmatpush1.xpose.msra.mxu0 0.0
    %75 = vmatprep.subr.mxu0 0.0
    %76 = vmatpush1.xpose.msra.mxu0 0.0
    %77 = vmatprep.subr.mxu0 0.0
    %78 = vmatpush1.xpose.msra.mxu0 0.0
    %79 = vmatprep.subr.mxu0 0.0
    %80 = vmatpush1.xpose.msra.mxu0 0.0
    %81 = vmatprep.subr.mxu0 0.0
    %82 = vmatpush1.xpose.msra.mxu0 0.0
    %83 = vmatprep.subr.mxu0 0.0
    %84 = vmatpush1.xpose.msra.mxu0 0.0
    %85 = vmatprep.subr.mxu0 0.0
    %86 = vmatpush1.xpose.msra.mxu0 0.0
    %87 = vmatprep.subr.mxu0 0.0
    %88 = vmatpush1.xpose.msra.mxu0 0.0
    %89 = vmatprep.subr.mxu0 0.0
    %90 = vmatpush1.xpose.msra.mxu0 0.0
    %91 = vmatprep.subr.mxu0 0.0
    %92 = vmatpush1.xpose.msra.mxu0 0.0
    %93 = vmatprep.subr.mxu0 0.0
    %94 = vmatpush1.xpose.msra.mxu0 0.0
    %95 = vmatprep.subr.mxu0 0.0
    %96 = vmatpush1.xpose.msra.mxu0 0.0
    %97 = vmatprep.subr.mxu0 0.0
    %98 = vmatpush1.xpose.msra.mxu0 0.0
    %99 = vmatprep.subr.mxu0 0.0
    %100 = vmatpush1.xpose.msra.mxu0 0.0
    %101 = vmatprep.subr.mxu0 0.0
    %102 = vmatpush1.xpose.msra.mxu0 0.0
    %103 = vmatprep.subr.mxu0 0.0
    %104 = vmatpush1.xpose.msra.mxu0 0.0
    %105 = vmatprep.subr.mxu0 0.0
    %106 = vmatpush1.xpose.msra.mxu0 0.0
    %107 = vmatprep.subr.mxu0 0.0
    %108 = vmatpush1.xpose.msra.mxu0 0.0
    %109 = vmatprep.subr.mxu0 0.0
    %110 = vmatpush1.xpose.msra.mxu0 0.0
    %111 = vmatprep.subr.mxu0 0.0
    %112 = vmatpush1.xpose.msra.mxu0 0.0
    %113 = vmatprep.subr.mxu0 0.0
    %114 = vmatpush1.xpose.msra.mxu0 0.0
    %115 = vmatprep.subr.mxu0 0.0
    %116 = vmatpush1.xpose.msra.mxu0 0.0
    %117 = vmatprep.subr.mxu0 0.0
    %118 = vmatpush1.xpose.msra.mxu0 0.0
    %119 = vmatprep.mubr.f32.mxu0 0.0
    %120 = vmatmul.mubr.f32.gmra.mrb[0].mxu0 %v50
    %v121 = vpop.f32.mrb[0].mxu0
    %v122 = vadd.f32 0.0, %v121
    %v123 = vpop.f32.mrb[0].mxu0
    %124 = vdwg.mxu0
    %v126 = vsel %vm48, %v25, 0
    %v129 = vsel %vm48, %v33, 0
    %131 = vmatprep.subr.mxu0 0.0
    %132 = vmatpush1.xpose.msra.mxu0 %v129
    %133 = vmatprep.subr.mxu0 0.0
    %134 = vmatpush1.xpose.msra.mxu0 0.0
    %135 = vmatprep.subr.mxu0 0.0
    %136 = vmatpush1.xpose.msra.mxu0 0.0
    %137 = vmatprep.subr.mxu0 0.0
    %138 = vmatpush1.xpose.msra.mxu0 0.0
    %139 = vmatprep.subr.mxu0 0.0
    %140 = vmatpush1.xpose.msra.mxu0 0.0
    %141 = vmatprep.subr.mxu0 0.0
    %142 = vmatpush1.xpose.msra.mxu0 0.0
    %143 = vmatprep.subr.mxu0 0.0
    %144 = vmatpush1.xpose.msra.mxu0 0.0
    %145 = vmatprep.subr.mxu0 0.0
    %146 = vmatpush1.xpose.msra.mxu0 0.0
    %147 = vmatprep.subr.mxu0 0.0
    %148 = vmatpush1.xpose.msra.mxu0 0.0
    %149 = vmatprep.subr.mxu0 0.0
    %150 = vmatpush1.xpose.msra.mxu0 0.0
    %151 = vmatprep.subr.mxu0 0.0
    %152 = vmatpush1.xpose.msra.mxu0 0.0
    %153 = vmatprep.subr.mxu0 0.0
    %154 = vmatpush1.xpose.msra.mxu0 0.0
    %155 = vmatprep.subr.mxu0 0.0
    %156 = vmatpush1.xpose.msra.mxu0 0.0
    %157 = vmatprep.subr.mxu0 0.0
    %158 = vmatpush1.xpose.msra.mxu0 0.0
    %159 = vmatprep.subr.mxu0 0.0
    %160 = vmatpush1.xpose.msra.mxu0 0.0
    %161 = vmatprep.subr.mxu0 0.0
    %162 = vmatpush1.xpose.msra.mxu0 0.0
    %163 = vmatprep.subr.mxu0 0.0
    %164 = vmatpush1.xpose.msra.mxu0 0.0
    %165 = vmatprep.subr.mxu0 0.0
    %166 = vmatpush1.xpose.msra.mxu0 0.0
    %167 = vmatprep.subr.mxu0 0.0
    %168 = vmatpush1.xpose.msra.mxu0 0.0
    %169 = vmatprep.subr.mxu0 0.0
    %170 = vmatpush1.xpose.msra.mxu0 0.0
    %171 = vmatprep.subr.mxu0 0.0
    %172 = vmatpush1.xpose.msra.mxu0 0.0
    %173 = vmatprep.subr.mxu0 0.0
    %174 = vmatpush1.xpose.msra.mxu0 0.0
    %175 = vmatprep.subr.mxu0 0.0
    %176 = vmatpush1.xpose.msra.mxu0 0.0
    %177 = vmatprep.subr.mxu0 0.0
    %178 = vmatpush1.xpose.msra.mxu0 0.0
    %179 = vmatprep.subr.mxu0 0.0
    %180 = vmatpush1.xpose.msra.mxu0 0.0
    %181 = vmatprep.subr.mxu0 0.0
    %182 = vmatpush1.xpose.msra.mxu0 0.0
    %183 = vmatprep.subr.mxu0 0.0
    %184 = vmatpush1.xpose.msra.mxu0 0.0
    %185 = vmatprep.subr.mxu0 0.0
    %186 = vmatpush1.xpose.msra.mxu0 0.0
    %187 = vmatprep.subr.mxu0 0.0
    %188 = vmatpush1.xpose.msra.mxu0 0.0
    %189 = vmatprep.subr.mxu0 0.0
    %190 = vmatpush1.xpose.msra.mxu0 0.0
    %191 = vmatprep.subr.mxu0 0.0
    %192 = vmatpush1.xpose.msra.mxu0 0.0
    %193 = vmatprep.subr.mxu0 0.0
    %194 = vmatpush1.xpose.msra.mxu0 0.0
    %195 = vmatprep.mubr.f32.mxu0 0.0
    %196 = vmatmul.mubr.f32.gmra.mrb[0].mxu0 %v126
    %v197 = vpop.f32.mrb[0].mxu0
    %v198 = vadd.f32 0.0, %v197
    %v199 = vpop.f32.mrb[0].mxu0
    %200 = vdwg.mxu0
    %v202 = vsel %vm48, %v26, 0
    %v205 = vsel %vm48, %v34, 0
    %207 = vmatprep.subr.mxu0 0.0
    %208 = vmatpush1.xpose.msra.mxu0 %v205
    %209 = vmatprep.subr.mxu0 0.0
    %210 = vmatpush1.xpose.msra.mxu0 0.0
    %211 = vmatprep.subr.mxu0 0.0
    %212 = vmatpush1.xpose.msra.mxu0 0.0
    %213 = vmatprep.subr.mxu0 0.0
    %214 = vmatpush1.xpose.msra.mxu0 0.0
    %215 = vmatprep.subr.mxu0 0.0
    %216 = vmatpush1.xpose.msra.mxu0 0.0
    %217 = vmatprep.subr.mxu0 0.0
    %218 = vmatpush1.xpose.msra.mxu0 0.0
    %219 = vmatprep.subr.mxu0 0.0
    %220 = vmatpush1.xpose.msra.mxu0 0.0
    %221 = vmatprep.subr.mxu0 0.0
    %222 = vmatpush1.xpose.msra.mxu0 0.0
    %223 = vmatprep.subr.mxu0 0.0
    %224 = vmatpush1.xpose.msra.mxu0 0.0
    %225 = vmatprep.subr.mxu0 0.0
    %226 = vmatpush1.xpose.msra.mxu0 0.0
    %227 = vmatprep.subr.mxu0 0.0
    %228 = vmatpush1.xpose.msra.mxu0 0.0
    %229 = vmatprep.subr.mxu0 0.0
    %230 = vmatpush1.xpose.msra.mxu0 0.0
    %231 = vmatprep.subr.mxu0 0.0
    %232 = vmatpush1.xpose.msra.mxu0 0.0
    %233 = vmatprep.subr.mxu0 0.0
    %234 = vmatpush1.xpose.msra.mxu0 0.0
    %235 = vmatprep.subr.mxu0 0.0
    %236 = vmatpush1.xpose.msra.mxu0 0.0
    %237 = vmatprep.subr.mxu0 0.0
    %238 = vmatpush1.xpose.msra.mxu0 0.0
    %239 = vmatprep.subr.mxu0 0.0
    %240 = vmatpush1.xpose.msra.mxu0 0.0
    %241 = vmatprep.subr.mxu0 0.0
    %242 = vmatpush1.xpose.msra.mxu0 0.0
    %243 = vmatprep.subr.mxu0 0.0
    %244 = vmatpush1.xpose.msra.mxu0 0.0
    %245 = vmatprep.subr.mxu0 0.0
    %246 = vmatpush1.xpose.msra.mxu0 0.0
    %247 = vmatprep.subr.mxu0 0.0
    %248 = vmatpush1.xpose.msra.mxu0 0.0
    %249 = vmatprep.subr.mxu0 0.0
    %250 = vmatpush1.xpose.msra.mxu0 0.0
    %251 = vmatprep.subr.mxu0 0.0
    %252 = vmatpush1.xpose.msra.mxu0 0.0
    %253 = vmatprep.subr.mxu0 0.0
    %254 = vmatpush1.xpose.msra.mxu0 0.0
    %255 = vmatprep.subr.mxu0 0.0
    %256 = vmatpush1.xpose.msra.mxu0 0.0
    %257 = vmatprep.subr.mxu0 0.0
    %258 = vmatpush1.xpose.msra.mxu0 0.0
    %259 = vmatprep.subr.mxu0 0.0
    %260 = vmatpush1.xpose.msra.mxu0 0.0
    %261 = vmatprep.subr.mxu0 0.0
    %262 = vmatpush1.xpose.msra.mxu0 0.0
    %263 = vmatprep.subr.mxu0 0.0
    %264 = vmatpush1.xpose.msra.mxu0 0.0
    %265 = vmatprep.subr.mxu0 0.0
    %266 = vmatpush1.xpose.msra.mxu0 0.0
    %267 = vmatprep.subr.mxu0 0.0
    %268 = vmatpush1.xpose.msra.mxu0 0.0
    %269 = vmatprep.subr.mxu0 0.0
    %270 = vmatpush1.xpose.msra.mxu0 0.0
    %271 = vmatprep.mubr.f32.mxu0 0.0
    %272 = vmatmul.mubr.f32.gmra.mrb[0].mxu0 %v202
    %v273 = vpop.f32.mrb[0].mxu0
    %v274 = vadd.f32 0.0, %v273
    %v275 = vpop.f32.mrb[0].mxu0
    %276 = vdwg.mxu0
    %v278 = vsel %vm48, %v27, 0
    %v281 = vsel %vm48, %v35, 0
    %283 = vmatprep.subr.mxu0 0.0
    %284 = vmatpush1.xpose.msra.mxu0 %v281
    %285 = vmatprep.subr.mxu0 0.0
    %286 = vmatpush1.xpose.msra.mxu0 0.0
    %287 = vmatprep.subr.mxu0 0.0
    %288 = vmatpush1.xpose.msra.mxu0 0.0
    %289 = vmatprep.subr.mxu0 0.0
    %290 = vmatpush1.xpose.msra.mxu0 0.0
    %291 = vmatprep.subr.mxu0 0.0
    %292 = vmatpush1.xpose.msra.mxu0 0.0
    %293 = vmatprep.subr.mxu0 0.0
    %294 = vmatpush1.xpose.msra.mxu0 0.0
    %295 = vmatprep.subr.mxu0 0.0
    %296 = vmatpush1.xpose.msra.mxu0 0.0
    %297 = vmatprep.subr.mxu0 0.0
    %298 = vmatpush1.xpose.msra.mxu0 0.0
    %299 = vmatprep.subr.mxu0 0.0
    %300 = vmatpush1.xpose.msra.mxu0 0.0
    %301 = vmatprep.subr.mxu0 0.0
    %302 = vmatpush1.xpose.msra.mxu0 0.0
    %303 = vmatprep.subr.mxu0 0.0
    %304 = vmatpush1.xpose.msra.mxu0 0.0
    %305 = vmatprep.subr.mxu0 0.0
    %306 = vmatpush1.xpose.msra.mxu0 0.0
    %307 = vmatprep.subr.mxu0 0.0
    %308 = vmatpush1.xpose.msra.mxu0 0.0
    %309 = vmatprep.subr.mxu0 0.0
    %310 = vmatpush1.xpose.msra.mxu0 0.0
    %311 = vmatprep.subr.mxu0 0.0
    %312 = vmatpush1.xpose.msra.mxu0 0.0
    %313 = vmatprep.subr.mxu0 0.0
    %314 = vmatpush1.xpose.msra.mxu0 0.0
    %315 = vmatprep.subr.mxu0 0.0
    %316 = vmatpush1.xpose.msra.mxu0 0.0
    %317 = vmatprep.subr.mxu0 0.0
    %318 = vmatpush1.xpose.msra.mxu0 0.0
    %319 = vmatprep.subr.mxu0 0.0
    %320 = vmatpush1.xpose.msra.mxu0 0.0
    %321 = vmatprep.subr.mxu0 0.0
    %322 = vmatpush1.xpose.msra.mxu0 0.0
    %323 = vmatprep.subr.mxu0 0.0
    %324 = vmatpush1.xpose.msra.mxu0 0.0
    %325 = vmatprep.subr.mxu0 0.0
    %326 = vmatpush1.xpose.msra.mxu0 0.0
    %327 = vmatprep.subr.mxu0 0.0
    %328 = vmatpush1.xpose.msra.mxu0 0.0
    %329 = vmatprep.subr.mxu0 0.0
    %330 = vmatpush1.xpose.msra.mxu0 0.0
    %331 = vmatprep.subr.mxu0 0.0
    %332 = vmatpush1.xpose.msra.mxu0 0.0
    %333 = vmatprep.subr.mxu0 0.0
    %334 = vmatpush1.xpose.msra.mxu0 0.0
    %335 = vmatprep.subr.mxu0 0.0
    %336 = vmatpush1.xpose.msra.mxu0 0.0
    %337 = vmatprep.subr.mxu0 0.0
    %338 = vmatpush1.xpose.msra.mxu0 0.0
    %339 = vmatprep.subr.mxu0 0.0
    %340 = vmatpush1.xpose.msra.mxu0 0.0
    %341 = vmatprep.subr.mxu0 0.0
    %342 = vmatpush1.xpose.msra.mxu0 0.0
    %343 = vmatprep.subr.mxu0 0.0
    %344 = vmatpush1.xpose.msra.mxu0 0.0
    %345 = vmatprep.subr.mxu0 0.0
    %346 = vmatpush1.xpose.msra.mxu0 0.0
    %347 = vmatprep.mubr.f32.mxu0 0.0
    %348 = vmatmul.mubr.f32.gmra.mrb[0].mxu0 %v278
    %v349 = vpop.f32.mrb[0].mxu0
    %v350 = vadd.f32 0.0, %v349
    %v351 = vpop.f32.mrb[0].mxu0
    %352 = vdwg.mxu0
    %v354 = vsel %vm48, %v28, 0
    %v357 = vsel %vm48, %v36, 0
    %359 = vmatprep.subr.mxu0 0.0
    %360 = vmatpush1.xpose.msra.mxu0 %v357
    %361 = vmatprep.subr.mxu0 0.0
    %362 = vmatpush1.xpose.msra.mxu0 0.0
    %363 = vmatprep.subr.mxu0 0.0
    %364 = vmatpush1.xpose.msra.mxu0 0.0
    %365 = vmatprep.subr.mxu0 0.0
    %366 = vmatpush1.xpose.msra.mxu0 0.0
    %367 = vmatprep.subr.mxu0 0.0
    %368 = vmatpush1.xpose.msra.mxu0 0.0
    %369 = vmatprep.subr.mxu0 0.0
    %370 = vmatpush1.xpose.msra.mxu0 0.0
    %371 = vmatprep.subr.mxu0 0.0
    %372 = vmatpush1.xpose.msra.mxu0 0.0
    %373 = vmatprep.subr.mxu0 0.0
    %374 = vmatpush1.xpose.msra.mxu0 0.0
    %375 = vmatprep.subr.mxu0 0.0
    %376 = vmatpush1.xpose.msra.mxu0 0.0
    %377 = vmatprep.subr.mxu0 0.0
    %378 = vmatpush1.xpose.msra.mxu0 0.0
    %379 = vmatprep.subr.mxu0 0.0
    %380 = vmatpush1.xpose.msra.mxu0 0.0
    %381 = vmatprep.subr.mxu0 0.0
    %382 = vmatpush1.xpose.msra.mxu0 0.0
    %383 = vmatprep.subr.mxu0 0.0
    %384 = vmatpush1.xpose.msra.mxu0 0.0
    %385 = vmatprep.subr.mxu0 0.0
    %386 = vmatpush1.xpose.msra.mxu0 0.0
    %387 = vmatprep.subr.mxu0 0.0
    %388 = vmatpush1.xpose.msra.mxu0 0.0
    %389 = vmatprep.subr.mxu0 0.0
    %390 = vmatpush1.xpose.msra.mxu0 0.0
    %391 = vmatprep.subr.mxu0 0.0
    %392 = vmatpush1.xpose.msra.mxu0 0.0
    %393 = vmatprep.subr.mxu0 0.0
    %394 = vmatpush1.xpose.msra.mxu0 0.0
    %395 = vmatprep.subr.mxu0 0.0
    %396 = vmatpush1.xpose.msra.mxu0 0.0
    %397 = vmatprep.subr.mxu0 0.0
    %398 = vmatpush1.xpose.msra.mxu0 0.0
    %399 = vmatprep.subr.mxu0 0.0
    %400 = vmatpush1.xpose.msra.mxu0 0.0
    %401 = vmatprep.subr.mxu0 0.0
    %402 = vmatpush1.xpose.msra.mxu0 0.0
    %403 = vmatprep.subr.mxu0 0.0
    %404 = vmatpush1.xpose.msra.mxu0 0.0
    %405 = vmatprep.subr.mxu0 0.0
    %406 = vmatpush1.xpose.msra.mxu0 0.0
    %407 = vmatprep.subr.mxu0 0.0
    %408 = vmatpush1.xpose.msra.mxu0 0.0
    %409 = vmatprep.subr.mxu0 0.0
    %410 = vmatpush1.xpose.msra.mxu0 0.0
    %411 = vmatprep.subr.mxu0 0.0
    %412 = vmatpush1.xpose.msra.mxu0 0.0
    %413 = vmatprep.subr.mxu0 0.0
    %414 = vmatpush1.xpose.msra.mxu0 0.0
    %415 = vmatprep.subr.mxu0 0.0
    %416 = vmatpush1.xpose.msra.mxu0 0.0
    %417 = vmatprep.subr.mxu0 0.0
    %418 = vmatpush1.xpose.msra.mxu0 0.0
    %419 = vmatprep.subr.mxu0 0.0
    %420 = vmatpush1.xpose.msra.mxu0 0.0
    %421 = vmatprep.subr.mxu0 0.0
    %422 = vmatpush1.xpose.msra.mxu0 0.0
    %423 = vmatprep.mubr.f32.mxu0 0.0
    %424 = vmatmul.mubr.f32.gmra.mrb[0].mxu0 %v354
    %v425 = vpop.f32.mrb[0].mxu0
    %v426 = vadd.f32 0.0, %v425
    %v427 = vpop.f32.mrb[0].mxu0
    %428 = vdwg.mxu0
    %v430 = vsel %vm48, %v29, 0
    %v433 = vsel %vm48, %v37, 0
    %435 = vmatprep.subr.mxu0 0.0
    %436 = vmatpush1.xpose.msra.mxu0 %v433
    %437 = vmatprep.subr.mxu0 0.0
    %438 = vmatpush1.xpose.msra.mxu0 0.0
    %439 = vmatprep.subr.mxu0 0.0
    %440 = vmatpush1.xpose.msra.mxu0 0.0
    %441 = vmatprep.subr.mxu0 0.0
    %442 = vmatpush1.xpose.msra.mxu0 0.0
    %443 = vmatprep.subr.mxu0 0.0
    %444 = vmatpush1.xpose.msra.mxu0 0.0
    %445 = vmatprep.subr.mxu0 0.0
    %446 = vmatpush1.xpose.msra.mxu0 0.0
    %447 = vmatprep.subr.mxu0 0.0
    %448 = vmatpush1.xpose.msra.mxu0 0.0
    %449 = vmatprep.subr.mxu0 0.0
    %450 = vmatpush1.xpose.msra.mxu0 0.0
    %451 = vmatprep.subr.mxu0 0.0
    %452 = vmatpush1.xpose.msra.mxu0 0.0
    %453 = vmatprep.subr.mxu0 0.0
    %454 = vmatpush1.xpose.msra.mxu0 0.0
    %455 = vmatprep.subr.mxu0 0.0
    %456 = vmatpush1.xpose.msra.mxu0 0.0
    %457 = vmatprep.subr.mxu0 0.0
    %458 = vmatpush1.xpose.msra.mxu0 0.0
    %459 = vmatprep.subr.mxu0 0.0
    %460 = vmatpush1.xpose.msra.mxu0 0.0
    %461 = vmatprep.subr.mxu0 0.0
    %462 = vmatpush1.xpose.msra.mxu0 0.0
    %463 = vmatprep.subr.mxu0 0.0
    %464 = vmatpush1.xpose.msra.mxu0 0.0
    %465 = vmatprep.subr.mxu0 0.0
    %466 = vmatpush1.xpose.msra.mxu0 0.0
    %467 = vmatprep.subr.mxu0 0.0
    %468 = vmatpush1.xpose.msra.mxu0 0.0
    %469 = vmatprep.subr.mxu0 0.0
    %470 = vmatpush1.xpose.msra.mxu0 0.0
    %471 = vmatprep.subr.mxu0 0.0
    %472 = vmatpush1.xpose.msra.mxu0 0.0
    %473 = vmatprep.subr.mxu0 0.0
    %474 = vmatpush1.xpose.msra.mxu0 0.0
    %475 = vmatprep.subr.mxu0 0.0
    %476 = vmatpush1.xpose.msra.mxu0 0.0
    %477 = vmatprep.subr.mxu0 0.0
    %478 = vmatpush1.xpose.msra.mxu0 0.0
    %479 = vmatprep.subr.mxu0 0.0
    %480 = vmatpush1.xpose.msra.mxu0 0.0
    %481 = vmatprep.subr.mxu0 0.0
    %482 = vmatpush1.xpose.msra.mxu0 0.0
    %483 = vmatprep.subr.mxu0 0.0
    %484 = vmatpush1.xpose.msra.mxu0 0.0
    %485 = vmatprep.subr.mxu0 0.0
    %486 = vmatpush1.xpose.msra.mxu0 0.0
    %487 = vmatprep.subr.mxu0 0.0
    %488 = vmatpush1.xpose.msra.mxu0 0.0
    %489 = vmatprep.subr.mxu0 0.0
    %490 = vmatpush1.xpose.msra.mxu0 0.0
    %491 = vmatprep.subr.mxu0 0.0
    %492 = vmatpush1.xpose.msra.mxu0 0.0
    %493 = vmatprep.subr.mxu0 0.0
    %494 = vmatpush1.xpose.msra.mxu0 0.0
    %495 = vmatprep.subr.mxu0 0.0
    %496 = vmatpush1.xpose.msra.mxu0 0.0
    %497 = vmatprep.subr.mxu0 0.0
    %498 = vmatpush1.xpose.msra.mxu0 0.0
    %499 = vmatprep.mubr.f32.mxu0 0.0
    %500 = vmatmul.mubr.f32.gmra.mrb[0].mxu0 %v430
    %v501 = vpop.f32.mrb[0].mxu0
    %v502 = vadd.f32 0.0, %v501
    %v503 = vpop.f32.mrb[0].mxu0
    %504 = vdwg.mxu0
    %v506 = vsel %vm48, %v30, 0
    %v509 = vsel %vm48, %v38, 0
    %511 = vmatprep.subr.mxu0 0.0
    %512 = vmatpush1.xpose.msra.mxu0 %v509
    %513 = vmatprep.subr.mxu0 0.0
    %514 = vmatpush1.xpose.msra.mxu0 0.0
    %515 = vmatprep.subr.mxu0 0.0
    %516 = vmatpush1.xpose.msra.mxu0 0.0
    %517 = vmatprep.subr.mxu0 0.0
    %518 = vmatpush1.xpose.msra.mxu0 0.0
    %519 = vmatprep.subr.mxu0 0.0
    %520 = vmatpush1.xpose.msra.mxu0 0.0
    %521 = vmatprep.subr.mxu0 0.0
    %522 = vmatpush1.xpose.msra.mxu0 0.0
    %523 = vmatprep.subr.mxu0 0.0
    %524 = vmatpush1.xpose.msra.mxu0 0.0
    %525 = vmatprep.subr.mxu0 0.0
    %526 = vmatpush1.xpose.msra.mxu0 0.0
    %527 = vmatprep.subr.mxu0 0.0
    %528 = vmatpush1.xpose.msra.mxu0 0.0
    %529 = vmatprep.subr.mxu0 0.0
    %530 = vmatpush1.xpose.msra.mxu0 0.0
    %531 = vmatprep.subr.mxu0 0.0
    %532 = vmatpush1.xpose.msra.mxu0 0.0
    %533 = vmatprep.subr.mxu0 0.0
    %534 = vmatpush1.xpose.msra.mxu0 0.0
    %535 = vmatprep.subr.mxu0 0.0
    %536 = vmatpush1.xpose.msra.mxu0 0.0
    %537 = vmatprep.subr.mxu0 0.0
    %538 = vmatpush1.xpose.msra.mxu0 0.0
    %539 = vmatprep.subr.mxu0 0.0
    %540 = vmatpush1.xpose.msra.mxu0 0.0
    %541 = vmatprep.subr.mxu0 0.0
    %542 = vmatpush1.xpose.msra.mxu0 0.0
    %543 = vmatprep.subr.mxu0 0.0
    %544 = vmatpush1.xpose.msra.mxu0 0.0
    %545 = vmatprep.subr.mxu0 0.0
    %546 = vmatpush1.xpose.msra.mxu0 0.0
    %547 = vmatprep.subr.mxu0 0.0
    %548 = vmatpush1.xpose.msra.mxu0 0.0
    %549 = vmatprep.subr.mxu0 0.0
    %550 = vmatpush1.xpose.msra.mxu0 0.0
    %551 = vmatprep.subr.mxu0 0.0
    %552 = vmatpush1.xpose.msra.mxu0 0.0
    %553 = vmatprep.subr.mxu0 0.0
    %554 = vmatpush1.xpose.msra.mxu0 0.0
    %555 = vmatprep.subr.mxu0 0.0
    %556 = vmatpush1.xpose.msra.mxu0 0.0
    %557 = vmatprep.subr.mxu0 0.0
    %558 = vmatpush1.xpose.msra.mxu0 0.0
    %559 = vmatprep.subr.mxu0 0.0
    %560 = vmatpush1.xpose.msra.mxu0 0.0
    %561 = vmatprep.subr.mxu0 0.0
    %562 = vmatpush1.xpose.msra.mxu0 0.0
    %563 = vmatprep.subr.mxu0 0.0
    %564 = vmatpush1.xpose.msra.mxu0 0.0
    %565 = vmatprep.subr.mxu0 0.0
    %566 = vmatpush1.xpose.msra.mxu0 0.0
    %567 = vmatprep.subr.mxu0 0.0
    %568 = vmatpush1.xpose.msra.mxu0 0.0
    %569 = vmatprep.subr.mxu0 0.0
    %570 = vmatpush1.xpose.msra.mxu0 0.0
    %571 = vmatprep.subr.mxu0 0.0
    %572 = vmatpush1.xpose.msra.mxu0 0.0
    %573 = vmatprep.subr.mxu0 0.0
    %574 = vmatpush1.xpose.msra.mxu0 0.0
    %575 = vmatprep.mubr.f32.mxu0 0.0
    %576 = vmatmul.mubr.f32.gmra.mrb[0].mxu0 %v506
    %v577 = vpop.f32.mrb[0].mxu0
    %v578 = vadd.f32 0.0, %v577
    %v579 = vpop.f32.mrb[0].mxu0
    %580 = vdwg.mxu0
    %v582 = vsel %vm48, %v31, 0
    %v585 = vsel %vm48, %v39, 0
    %587 = vmatprep.subr.mxu0 0.0
    %588 = vmatpush1.xpose.msra.mxu0 %v585
    %589 = vmatprep.subr.mxu0 0.0
    %590 = vmatpush1.xpose.msra.mxu0 0.0
    %591 = vmatprep.subr.mxu0 0.0
    %592 = vmatpush1.xpose.msra.mxu0 0.0
    %593 = vmatprep.subr.mxu0 0.0
    %594 = vmatpush1.xpose.msra.mxu0 0.0
    %595 = vmatprep.subr.mxu0 0.0
    %596 = vmatpush1.xpose.msra.mxu0 0.0
    %597 = vmatprep.subr.mxu0 0.0
    %598 = vmatpush1.xpose.msra.mxu0 0.0
    %599 = vmatprep.subr.mxu0 0.0
    %600 = vmatpush1.xpose.msra.mxu0 0.0
    %601 = vmatprep.subr.mxu0 0.0
    %602 = vmatpush1.xpose.msra.mxu0 0.0
    %603 = vmatprep.subr.mxu0 0.0
    %604 = vmatpush1.xpose.msra.mxu0 0.0
    %605 = vmatprep.subr.mxu0 0.0
    %606 = vmatpush1.xpose.msra.mxu0 0.0
    %607 = vmatprep.subr.mxu0 0.0
    %608 = vmatpush1.xpose.msra.mxu0 0.0
    %609 = vmatprep.subr.mxu0 0.0
    %610 = vmatpush1.xpose.msra.mxu0 0.0
    %611 = vmatprep.subr.mxu0 0.0
    %612 = vmatpush1.xpose.msra.mxu0 0.0
    %613 = vmatprep.subr.mxu0 0.0
    %614 = vmatpush1.xpose.msra.mxu0 0.0
    %615 = vmatprep.subr.mxu0 0.0
    %616 = vmatpush1.xpose.msra.mxu0 0.0
    %617 = vmatprep.subr.mxu0 0.0
    %618 = vmatpush1.xpose.msra.mxu0 0.0
    %619 = vmatprep.subr.mxu0 0.0
    %620 = vmatpush1.xpose.msra.mxu0 0.0
    %621 = vmatprep.subr.mxu0 0.0
    %622 = vmatpush1.xpose.msra.mxu0 0.0
    %623 = vmatprep.subr.mxu0 0.0
    %624 = vmatpush1.xpose.msra.mxu0 0.0
    %625 = vmatprep.subr.mxu0 0.0
    %626 = vmatpush1.xpose.msra.mxu0 0.0
    %627 = vmatprep.subr.mxu0 0.0
    %628 = vmatpush1.xpose.msra.mxu0 0.0
    %629 = vmatprep.subr.mxu0 0.0
    %630 = vmatpush1.xpose.msra.mxu0 0.0
    %631 = vmatprep.subr.mxu0 0.0
    %632 = vmatpush1.xpose.msra.mxu0 0.0
    %633 = vmatprep.subr.mxu0 0.0
    %634 = vmatpush1.xpose.msra.mxu0 0.0
    %635 = vmatprep.subr.mxu0 0.0
    %636 = vmatpush1.xpose.msra.mxu0 0.0
    %637 = vmatprep.subr.mxu0 0.0
    %638 = vmatpush1.xpose.msra.mxu0 0.0
    %639 = vmatprep.subr.mxu0 0.0
    %640 = vmatpush1.xpose.msra.mxu0 0.0
    %641 = vmatprep.subr.mxu0 0.0
    %642 = vmatpush1.xpose.msra.mxu0 0.0
    %643 = vmatprep.subr.mxu0 0.0
    %644 = vmatpush1.xpose.msra.mxu0 0.0
    %645 = vmatprep.subr.mxu0 0.0
    %646 = vmatpush1.xpose.msra.mxu0 0.0
    %647 = vmatprep.subr.mxu0 0.0
    %648 = vmatpush1.xpose.msra.mxu0 0.0
    %649 = vmatprep.subr.mxu0 0.0
    %650 = vmatpush1.xpose.msra.mxu0 0.0
    %651 = vmatprep.mubr.f32.mxu0 0.0
    %652 = vmatmul.mubr.f32.gmra.mrb[0].mxu0 %v582
    %v653 = vpop.f32.mrb[0].mxu0
    %v654 = vadd.f32 0.0, %v653
    %v655 = vpop.f32.mrb[0].mxu0
    %656 = vdwg.mxu0
    %v657 = vmul.f32 %v122, 0.35355338
    %v658 = vmul.f32 %v198, 0.35355338
    %v659 = vmul.f32 %v274, 0.35355338
    %v660 = vmul.f32 %v350, 0.35355338
    %v661 = vmul.f32 %v426, 0.35355338
    %v662 = vmul.f32 %v502, 0.35355338
    %v663 = vmul.f32 %v578, 0.35355338
    %v664 = vmul.f32 %v654, 0.35355338
    %v665 = vsel %vm48, %v657, -inf
    %666 = vmax.xlane.f32.xlu0 %v665
    %v667 = vpop.xlane.xlu0 %666
    %v668 = vsel %vm48, %v658, -inf
    %669 = vmax.xlane.f32.xlu0 %v668
    %v670 = vpop.xlane.xlu0 %669
    %v671 = vsel %vm48, %v659, -inf
    %672 = vmax.xlane.f32.xlu0 %v671
    %v673 = vpop.xlane.xlu0 %672
    %v674 = vsel %vm48, %v660, -inf
    %675 = vmax.xlane.f32.xlu0 %v674
    %v676 = vpop.xlane.xlu0 %675
    %v677 = vsel %vm48, %v661, -inf
    %678 = vmax.xlane.f32.xlu0 %v677
    %v679 = vpop.xlane.xlu0 %678
    %v680 = vsel %vm48, %v662, -inf
    %681 = vmax.xlane.f32.xlu0 %v680
    %v682 = vpop.xlane.xlu0 %681
    %v683 = vsel %vm48, %v663, -inf
    %684 = vmax.xlane.f32.xlu0 %v683
    %v685 = vpop.xlane.xlu0 %684
    %v686 = vsel %vm48, %v664, -inf
    %687 = vmax.xlane.f32.xlu0 %v686
    %v688 = vpop.xlane.xlu0 %687
    %v689 = vsub.f32 %v657, %v667
    %v690 = vsub.f32 %v658, %v670
    %v691 = vsub.f32 %v659, %v673
    %v692 = vsub.f32 %v660, %v676
    %v693 = vsub.f32 %v661, %v679
    %v694 = vsub.f32 %v662, %v682
    %v695 = vsub.f32 %v663, %v685
    %v696 = vsub.f32 %v664, %v688
    %v697 = vmul.f32 %v689, 1.442695
    %v698 = vpow.pop %v697
    %v699 = vmul.f32 %v690, 1.442695
    %v700 = vpow.pop %v699
    %v701 = vmul.f32 %v691, 1.442695
    %v702 = vpow.pop %v701
    %v703 = vmul.f32 %v692, 1.442695
    %v704 = vpow.pop %v703
    %v705 = vmul.f32 %v693, 1.442695
    %v706 = vpow.pop %v705
    %v707 = vmul.f32 %v694, 1.442695
    %v708 = vpow.pop %v707
    %v709 = vmul.f32 %v695, 1.442695
    %v710 = vpow.pop %v709
    %v711 = vmul.f32 %v696, 1.442695
    %v712 = vpow.pop %v711
    %v713 = vsel %vm48, %v698, 0.0
    %714 = vadd.xlane.f32.xlu0 %v713
    %v715 = vpop.xlane.xlu0 %714
    %v716 = vsel %vm48, %v700, 0.0
    %717 = vadd.xlane.f32.xlu0 %v716
    %v718 = vpop.xlane.xlu0 %717
    %v719 = vsel %vm48, %v702, 0.0
    %720 = vadd.xlane.f32.xlu0 %v719
    %v721 = vpop.xlane.xlu0 %720
    %v722 = vsel %vm48, %v704, 0.0
    %723 = vadd.xlane.f32.xlu0 %v722
    %v724 = vpop.xlane.xlu0 %723
    %v725 = vsel %vm48, %v706, 0.0
    %726 = vadd.xlane.f32.xlu0 %v725
    %v727 = vpop.xlane.xlu0 %726
    %v728 = vsel %vm48, %v708, 0.0
    %729 = vadd.xlane.f32.xlu0 %v728
    %v730 = vpop.xlane.xlu0 %729
    %v731 = vsel %vm48, %v710, 0.0
    %732 = vadd.xlane.f32.xlu0 %v731
    %v733 = vpop.xlane.xlu0 %732
    %v734 = vsel %vm48, %v712, 0.0
    %735 = vadd.xlane.f32.xlu0 %v734
    %v736 = vpop.xlane.xlu0 %735
    %v737 = vrcp.pop %v715
    %v738 = vrcp.pop %v718
    %v739 = vrcp.pop %v721
    %v740 = vrcp.pop %v724
    %v741 = vrcp.pop %v727
    %v742 = vrcp.pop %v730
    %v743 = vrcp.pop %v733
    %v744 = vrcp.pop %v736
    %v745 = vmul.f32 %v715, %v737
    %v746 = vmul.f32 %v718, %v738
    %v747 = vmul.f32 %v721, %v739
    %v748 = vmul.f32 %v724, %v740
    %v749 = vmul.f32 %v727, %v741
    %v750 = vmul.f32 %v730, %v742
    %v751 = vmul.f32 %v733, %v743
    %v752 = vmul.f32 %v736, %v744
    %v753 = vsub.f32 2.0, %v745
    %v754 = vsub.f32 2.0, %v746
    %v755 = vsub.f32 2.0, %v747
    %v756 = vsub.f32 2.0, %v748
    %v757 = vsub.f32 2.0, %v749
    %v758 = vsub.f32 2.0, %v750
    %v759 = vsub.f32 2.0, %v751
    %v760 = vsub.f32 2.0, %v752
    %v761 = vmul.f32 %v737, %v753
    %v762 = vmul.f32 %v738, %v754
    %v763 = vmul.f32 %v739, %v755
    %v764 = vmul.f32 %v740, %v756
    %v765 = vmul.f32 %v741, %v757
    %v766 = vmul.f32 %v742, %v758
    %v767 = vmul.f32 %v743, %v759
    %v768 = vmul.f32 %v744, %v760
    %v769 = vmul.f32 %v698, %v761
    %v770 = vmul.f32 %v700, %v762
    %v771 = vmul.f32 %v702, %v763
    %v772 = vmul.f32 %v704, %v764
    %v773 = vmul.f32 %v706, %v765
    %v774 = vmul.f32 %v708, %v766
    %v775 = vmul.f32 %v710, %v767
    %v776 = vmul.f32 %v712, %v768
    %777 = vst.msk [vmem:[#allocation4] sm:$0xff] %vm48, %v769
    %778 = vst.msk [vmem:[#allocation4 + $0x8] sm:$0xff] %vm48, %v770
    %779 = vst.msk [vmem:[#allocation4 + $0x10] sm:$0xff] %vm48, %v771
    %780 = vst.msk [vmem:[#allocation4 + $0x18] sm:$0xff] %vm48, %v772
    %781 = vst.msk [vmem:[#allocation4 + $0x20] sm:$0xff] %vm48, %v773
    %782 = vst.msk [vmem:[#allocation4 + $0x28] sm:$0xff] %vm48, %v774
    %783 = vst.msk [vmem:[#allocation4 + $0x30] sm:$0xff] %vm48, %v775
    %784 = vst.msk [vmem:[#allocation4 + $0x38] sm:$0xff] %vm48, %v776
    %v786 = vsel %vm48, %v769, 0
    %788 = vmatprep.subr.mxu0 0.0
    %789 = vmatpush1.msra.mxu0 %v40
    %790 = vmatprep.subr.mxu0 0.0
    %791 = vmatpush1.msra.mxu0 0.0
    %792 = vmatprep.subr.mxu0 0.0
    %793 = vmatpush1.msra.mxu0 0.0
    %794 = vmatprep.subr.mxu0 0.0
    %795 = vmatpush1.msra.mxu0 0.0
    %796 = vmatprep.subr.mxu0 0.0
    %797 = vmatpush1.msra.mxu0 0.0
    %798 = vmatprep.subr.mxu0 0.0
    %799 = vmatpush1.msra.mxu0 0.0
    %800 = vmatprep.subr.mxu0 0.0
    %801 = vmatpush1.msra.mxu0 0.0
    %802 = vmatprep.subr.mxu0 0.0
    %803 = vmatpush1.msra.mxu0 0.0
    %804 = vmatprep.subr.mxu0 0.0
    %805 = vmatpush1.msra.mxu0 0.0
    %806 = vmatprep.subr.mxu0 0.0
    %807 = vmatpush1.msra.mxu0 0.0
    %808 = vmatprep.subr.mxu0 0.0
    %809 = vmatpush1.msra.mxu0 0.0
    %810 = vmatprep.subr.mxu0 0.0
    %811 = vmatpush1.msra.mxu0 0.0
    %812 = vmatprep.subr.mxu0 0.0
    %813 = vmatpush1.msra.mxu0 0.0
    %814 = vmatprep.subr.mxu0 0.0
    %815 = vmatpush1.msra.mxu0 0.0
    %816 = vmatprep.subr.mxu0 0.0
    %817 = vmatpush1.msra.mxu0 0.0
    %818 = vmatprep.subr.mxu0 0.0
    %819 = vmatpush1.msra.mxu0 0.0
    %820 = vmatprep.subr.mxu0 0.0
    %821 = vmatpush1.msra.mxu0 0.0
    %822 = vmatprep.subr.mxu0 0.0
    %823 = vmatpush1.msra.mxu0 0.0
    %824 = vmatprep.subr.mxu0 0.0
    %825 = vmatpush1.msra.mxu0 0.0
    %826 = vmatprep.subr.mxu0 0.0
    %827 = vmatpush1.msra.mxu0 0.0
    %828 = vmatprep.subr.mxu0 0.0
    %829 = vmatpush1.msra.mxu0 0.0
    %830 = vmatprep.subr.mxu0 0.0
    %831 = vmatpush1.msra.mxu0 0.0
    %832 = vmatprep.subr.mxu0 0.0
    %833 = vmatpush1.msra.mxu0 0.0
    %834 = vmatprep.subr.mxu0 0.0
    %835 = vmatpush1.msra.mxu0 0.0
    %836 = vmatprep.subr.mxu0 0.0
    %837 = vmatpush1.msra.mxu0 0.0
    %838 = vmatprep.subr.mxu0 0.0
    %839 = vmatpush1.msra.mxu0 0.0
    %840 = vmatprep.subr.mxu0 0.0
    %841 = vmatpush1.msra.mxu0 0.0
    %842 = vmatprep.subr.mxu0 0.0
    %843 = vmatpush1.msra.mxu0 0.0
    %844 = vmatprep.subr.mxu0 0.0
    %845 = vmatpush1.msra.mxu0 0.0
    %846 = vmatprep.subr.mxu0 0.0
    %847 = vmatpush1.msra.mxu0 0.0
    %848 = vmatprep.subr.mxu0 0.0
    %849 = vmatpush1.msra.mxu0 0.0
    %850 = vmatprep.subr.mxu0 0.0
    %851 = vmatpush1.msra.mxu0 0.0
    %852 = vmatprep.mubr.f32.mxu0 0.0
    %853 = vmatmul.mubr.f32.gmra.mrb[0].mxu0 %v786
    %v854 = vpop.f32.mrb[0].mxu0
    %v855 = vadd.f32 0.0, %v854
    %v856 = vpop.f32.mrb[0].mxu0
    %857 = vdwg.mxu0
    %v859 = vsel %vm48, %v770, 0
    %861 = vmatprep.subr.mxu0 0.0
    %862 = vmatpush1.msra.mxu0 %v41
    %863 = vmatprep.subr.mxu0 0.0
    %864 = vmatpush1.msra.mxu0 0.0
    %865 = vmatprep.subr.mxu0 0.0
    %866 = vmatpush1.msra.mxu0 0.0
    %867 = vmatprep.subr.mxu0 0.0
    %868 = vmatpush1.msra.mxu0 0.0
    %869 = vmatprep.subr.mxu0 0.0
    %870 = vmatpush1.msra.mxu0 0.0
    %871 = vmatprep.subr.mxu0 0.0
    %872 = vmatpush1.msra.mxu0 0.0
    %873 = vmatprep.subr.mxu0 0.0
    %874 = vmatpush1.msra.mxu0 0.0
    %875 = vmatprep.subr.mxu0 0.0
    %876 = vmatpush1.msra.mxu0 0.0
    %877 = vmatprep.subr.mxu0 0.0
    %878 = vmatpush1.msra.mxu0 0.0
    %879 = vmatprep.subr.mxu0 0.0
    %880 = vmatpush1.msra.mxu0 0.0
    %881 = vmatprep.subr.mxu0 0.0
    %882 = vmatpush1.msra.mxu0 0.0
    %883 = vmatprep.subr.mxu0 0.0
    %884 = vmatpush1.msra.mxu0 0.0
    %885 = vmatprep.subr.mxu0 0.0
    %886 = vmatpush1.msra.mxu0 0.0
    %887 = vmatprep.subr.mxu0 0.0
    %888 = vmatpush1.msra.mxu0 0.0
    %889 = vmatprep.subr.mxu0 0.0
    %890 = vmatpush1.msra.mxu0 0.0
    %891 = vmatprep.subr.mxu0 0.0
    %892 = vmatpush1.msra.mxu0 0.0
    %893 = vmatprep.subr.mxu0 0.0
    %894 = vmatpush1.msra.mxu0 0.0
    %895 = vmatprep.subr.mxu0 0.0
    %896 = vmatpush1.msra.mxu0 0.0
    %897 = vmatprep.subr.mxu0 0.0
    %898 = vmatpush1.msra.mxu0 0.0
    %899 = vmatprep.subr.mxu0 0.0
    %900 = vmatpush1.msra.mxu0 0.0
    %901 = vmatprep.subr.mxu0 0.0
    %902 = vmatpush1.msra.mxu0 0.0
    %903 = vmatprep.subr.mxu0 0.0
    %904 = vmatpush1.msra.mxu0 0.0
    %905 = vmatprep.subr.mxu0 0.0
    %906 = vmatpush1.msra.mxu0 0.0
    %907 = vmatprep.subr.mxu0 0.0
    %908 = vmatpush1.msra.mxu0 0.0
    %909 = vmatprep.subr.mxu0 0.0
    %910 = vmatpush1.msra.mxu0 0.0
    %911 = vmatprep.subr.mxu0 0.0
    %912 = vmatpush1.msra.mxu0 0.0
    %913 = vmatprep.subr.mxu0 0.0
    %914 = vmatpush1.msra.mxu0 0.0
    %915 = vmatprep.subr.mxu0 0.0
    %916 = vmatpush1.msra.mxu0 0.0
    %917 = vmatprep.subr.mxu0 0.0
    %918 = vmatpush1.msra.mxu0 0.0
    %919 = vmatprep.subr.mxu0 0.0
    %920 = vmatpush1.msra.mxu0 0.0
    %921 = vmatprep.subr.mxu0 0.0
    %922 = vmatpush1.msra.mxu0 0.0
    %923 = vmatprep.subr.mxu0 0.0
    %924 = vmatpush1.msra.mxu0 0.0
    %925 = vmatprep.mubr.f32.mxu0 0.0
    %926 = vmatmul.mubr.f32.gmra.mrb[0].mxu0 %v859
    %v927 = vpop.f32.mrb[0].mxu0
    %v928 = vadd.f32 0.0, %v927
    %v929 = vpop.f32.mrb[0].mxu0
    %930 = vdwg.mxu0
    %v932 = vsel %vm48, %v771, 0
    %934 = vmatprep.subr.mxu0 0.0
    %935 = vmatpush1.msra.mxu0 %v42
    %936 = vmatprep.subr.mxu0 0.0
    %937 = vmatpush1.msra.mxu0 0.0
    %938 = vmatprep.subr.mxu0 0.0
    %939 = vmatpush1.msra.mxu0 0.0
    %940 = vmatprep.subr.mxu0 0.0
    %941 = vmatpush1.msra.mxu0 0.0
    %942 = vmatprep.subr.mxu0 0.0
    %943 = vmatpush1.msra.mxu0 0.0
    %944 = vmatprep.subr.mxu0 0.0
    %945 = vmatpush1.msra.mxu0 0.0
    %946 = vmatprep.subr.mxu0 0.0
    %947 = vmatpush1.msra.mxu0 0.0
    %948 = vmatprep.subr.mxu0 0.0
    %949 = vmatpush1.msra.mxu0 0.0
    %950 = vmatprep.subr.mxu0 0.0
    %951 = vmatpush1.msra.mxu0 0.0
    %952 = vmatprep.subr.mxu0 0.0
    %953 = vmatpush1.msra.mxu0 0.0
    %954 = vmatprep.subr.mxu0 0.0
    %955 = vmatpush1.msra.mxu0 0.0
    %956 = vmatprep.subr.mxu0 0.0
    %957 = vmatpush1.msra.mxu0 0.0
    %958 = vmatprep.subr.mxu0 0.0
    %959 = vmatpush1.msra.mxu0 0.0
    %960 = vmatprep.subr.mxu0 0.0
    %961 = vmatpush1.msra.mxu0 0.0
    %962 = vmatprep.subr.mxu0 0.0
    %963 = vmatpush1.msra.mxu0 0.0
    %964 = vmatprep.subr.mxu0 0.0
    %965 = vmatpush1.msra.mxu0 0.0
    %966 = vmatprep.subr.mxu0 0.0
    %967 = vmatpush1.msra.mxu0 0.0
    %968 = vmatprep.subr.mxu0 0.0
    %969 = vmatpush1.msra.mxu0 0.0
    %970 = vmatprep.subr.mxu0 0.0
    %971 = vmatpush1.msra.mxu0 0.0
    %972 = vmatprep.subr.mxu0 0.0
    %973 = vmatpush1.msra.mxu0 0.0
    %974 = vmatprep.subr.mxu0 0.0
    %975 = vmatpush1.msra.mxu0 0.0
    %976 = vmatprep.subr.mxu0 0.0
    %977 = vmatpush1.msra.mxu0 0.0
    %978 = vmatprep.subr.mxu0 0.0
    %979 = vmatpush1.msra.mxu0 0.0
    %980 = vmatprep.subr.mxu0 0.0
    %981 = vmatpush1.msra.mxu0 0.0
    %982 = vmatprep.subr.mxu0 0.0
    %983 = vmatpush1.msra.mxu0 0.0
    %984 = vmatprep.subr.mxu0 0.0
    %985 = vmatpush1.msra.mxu0 0.0
    %986 = vmatprep.subr.mxu0 0.0
    %987 = vmatpush1.msra.mxu0 0.0
    %988 = vmatprep.subr.mxu0 0.0
    %989 = vmatpush1.msra.mxu0 0.0
    %990 = vmatprep.subr.mxu0 0.0
    %991 = vmatpush1.msra.mxu0 0.0
    %992 = vmatprep.subr.mxu0 0.0
    %993 = vmatpush1.msra.mxu0 0.0
    %994 = vmatprep.subr.mxu0 0.0
    %995 = vmatpush1.msra.mxu0 0.0
    %996 = vmatprep.subr.mxu0 0.0
    %997 = vmatpush1.msra.mxu0 0.0
    %998 = vmatprep.mubr.f32.mxu0 0.0
    %999 = vmatmul.mubr.f32.gmra.mrb[0].mxu0 %v932
    %v1000 = vpop.f32.mrb[0].mxu0
    %v1001 = vadd.f32 0.0, %v1000
    %v1002 = vpop.f32.mrb[0].mxu0
    %1003 = vdwg.mxu0
    %v1005 = vsel %vm48, %v772, 0
    %1007 = vmatprep.subr.mxu0 0.0
    %1008 = vmatpush1.msra.mxu0 %v43
    %1009 = vmatprep.subr.mxu0 0.0
    %1010 = vmatpush1.msra.mxu0 0.0
    %1011 = vmatprep.subr.mxu0 0.0
    %1012 = vmatpush1.msra.mxu0 0.0
    %1013 = vmatprep.subr.mxu0 0.0
    %1014 = vmatpush1.msra.mxu0 0.0
    %1015 = vmatprep.subr.mxu0 0.0
    %1016 = vmatpush1.msra.mxu0 0.0
    %1017 = vmatprep.subr.mxu0 0.0
    %1018 = vmatpush1.msra.mxu0 0.0
    %1019 = vmatprep.subr.mxu0 0.0
    %1020 = vmatpush1.msra.mxu0 0.0
    %1021 = vmatprep.subr.mxu0 0.0
    %1022 = vmatpush1.msra.mxu0 0.0
    %1023 = vmatprep.subr.mxu0 0.0
    %1024 = vmatpush1.msra.mxu0 0.0
    %1025 = vmatprep.subr.mxu0 0.0
    %1026 = vmatpush1.msra.mxu0 0.0
    %1027 = vmatprep.subr.mxu0 0.0
    %1028 = vmatpush1.msra.mxu0 0.0
    %1029 = vmatprep.subr.mxu0 0.0
    %1030 = vmatpush1.msra.mxu0 0.0
    %1031 = vmatprep.subr.mxu0 0.0
    %1032 = vmatpush1.msra.mxu0 0.0
    %1033 = vmatprep.subr.mxu0 0.0
    %1034 = vmatpush1.msra.mxu0 0.0
    %1035 = vmatprep.subr.mxu0 0.0
    %1036 = vmatpush1.msra.mxu0 0.0
    %1037 = vmatprep.subr.mxu0 0.0
    %1038 = vmatpush1.msra.mxu0 0.0
    %1039 = vmatprep.subr.mxu0 0.0
    %1040 = vmatpush1.msra.mxu0 0.0
    %1041 = vmatprep.subr.mxu0 0.0
    %1042 = vmatpush1.msra.mxu0 0.0
    %1043 = vmatprep.subr.mxu0 0.0
    %1044 = vmatpush1.msra.mxu0 0.0
    %1045 = vmatprep.subr.mxu0 0.0
    %1046 = vmatpush1.msra.mxu0 0.0
    %1047 = vmatprep.subr.mxu0 0.0
    %1048 = vmatpush1.msra.mxu0 0.0
    %1049 = vmatprep.subr.mxu0 0.0
    %1050 = vmatpush1.msra.mxu0 0.0
    %1051 = vmatprep.subr.mxu0 0.0
    %1052 = vmatpush1.msra.mxu0 0.0
    %1053 = vmatprep.subr.mxu0 0.0
    %1054 = vmatpush1.msra.mxu0 0.0
    %1055 = vmatprep.subr.mxu0 0.0
    %1056 = vmatpush1.msra.mxu0 0.0
    %1057 = vmatprep.subr.mxu0 0.0
    %1058 = vmatpush1.msra.mxu0 0.0
    %1059 = vmatprep.subr.mxu0 0.0
    %1060 = vmatpush1.msra.mxu0 0.0
    %1061 = vmatprep.subr.mxu0 0.0
    %1062 = vmatpush1.msra.mxu0 0.0
    %1063 = vmatprep.subr.mxu0 0.0
    %1064 = vmatpush1.msra.mxu0 0.0
    %1065 = vmatprep.subr.mxu0 0.0
    %1066 = vmatpush1.msra.mxu0 0.0
    %1067 = vmatprep.subr.mxu0 0.0
    %1068 = vmatpush1.msra.mxu0 0.0
    %1069 = vmatprep.subr.mxu0 0.0
    %1070 = vmatpush1.msra.mxu0 0.0
    %1071 = vmatprep.mubr.f32.mxu0 0.0
    %1072 = vmatmul.mubr.f32.gmra.mrb[0].mxu0 %v1005
    %v1073 = vpop.f32.mrb[0].mxu0
    %v1074 = vadd.f32 0.0, %v1073
    %v1075 = vpop.f32.mrb[0].mxu0
    %1076 = vdwg.mxu0
    %v1078 = vsel %vm48, %v773, 0
    %1080 = vmatprep.subr.mxu0 0.0
    %1081 = vmatpush1.msra.mxu0 %v44
    %1082 = vmatprep.subr.mxu0 0.0
    %1083 = vmatpush1.msra.mxu0 0.0
    %1084 = vmatprep.subr.mxu0 0.0
    %1085 = vmatpush1.msra.mxu0 0.0
    %1086 = vmatprep.subr.mxu0 0.0
    %1087 = vmatpush1.msra.mxu0 0.0
    %1088 = vmatprep.subr.mxu0 0.0
    %1089 = vmatpush1.msra.mxu0 0.0
    %1090 = vmatprep.subr.mxu0 0.0
    %1091 = vmatpush1.msra.mxu0 0.0
    %1092 = vmatprep.subr.mxu0 0.0
    %1093 = vmatpush1.msra.mxu0 0.0
    %1094 = vmatprep.subr.mxu0 0.0
    %1095 = vmatpush1.msra.mxu0 0.0
    %1096 = vmatprep.subr.mxu0 0.0
    %1097 = vmatpush1.msra.mxu0 0.0
    %1098 = vmatprep.subr.mxu0 0.0
    %1099 = vmatpush1.msra.mxu0 0.0
    %1100 = vmatprep.subr.mxu0 0.0
    %1101 = vmatpush1.msra.mxu0 0.0
    %1102 = vmatprep.subr.mxu0 0.0
    %1103 = vmatpush1.msra.mxu0 0.0
    %1104 = vmatprep.subr.mxu0 0.0
    %1105 = vmatpush1.msra.mxu0 0.0
    %1106 = vmatprep.subr.mxu0 0.0
    %1107 = vmatpush1.msra.mxu0 0.0
    %1108 = vmatprep.subr.mxu0 0.0
    %1109 = vmatpush1.msra.mxu0 0.0
    %1110 = vmatprep.subr.mxu0 0.0
    %1111 = vmatpush1.msra.mxu0 0.0
    %1112 = vmatprep.subr.mxu0 0.0
    %1113 = vmatpush1.msra.mxu0 0.0
    %1114 = vmatprep.subr.mxu0 0.0
    %1115 = vmatpush1.msra.mxu0 0.0
    %1116 = vmatprep.subr.mxu0 0.0
    %1117 = vmatpush1.msra.mxu0 0.0
    %1118 = vmatprep.subr.mxu0 0.0
    %1119 = vmatpush1.msra.mxu0 0.0
    %1120 = vmatprep.subr.mxu0 0.0
    %1121 = vmatpush1.msra.mxu0 0.0
    %1122 = vmatprep.subr.mxu0 0.0
    %1123 = vmatpush1.msra.mxu0 0.0
    %1124 = vmatprep.subr.mxu0 0.0
    %1125 = vmatpush1.msra.mxu0 0.0
    %1126 = vmatprep.subr.mxu0 0.0
    %1127 = vmatpush1.msra.mxu0 0.0
    %1128 = vmatprep.subr.mxu0 0.0
    %1129 = vmatpush1.msra.mxu0 0.0
    %1130 = vmatprep.subr.mxu0 0.0
    %1131 = vmatpush1.msra.mxu0 0.0
    %1132 = vmatprep.subr.mxu0 0.0
    %1133 = vmatpush1.msra.mxu0 0.0
    %1134 = vmatprep.subr.mxu0 0.0
    %1135 = vmatpush1.msra.mxu0 0.0
    %1136 = vmatprep.subr.mxu0 0.0
    %1137 = vmatpush1.msra.mxu0 0.0
    %1138 = vmatprep.subr.mxu0 0.0
    %1139 = vmatpush1.msra.mxu0 0.0
    %1140 = vmatprep.subr.mxu0 0.0
    %1141 = vmatpush1.msra.mxu0 0.0
    %1142 = vmatprep.subr.mxu0 0.0
    %1143 = vmatpush1.msra.mxu0 0.0
    %1144 = vmatprep.mubr.f32.mxu0 0.0
    %1145 = vmatmul.mubr.f32.gmra.mrb[0].mxu0 %v1078
    %v1146 = vpop.f32.mrb[0].mxu0
    %v1147 = vadd.f32 0.0, %v1146
    %v1148 = vpop.f32.mrb[0].mxu0
    %1149 = vdwg.mxu0
    %v1151 = vsel %vm48, %v774, 0
    %1153 = vmatprep.subr.mxu0 0.0
    %1154 = vmatpush1.msra.mxu0 %v45
    %1155 = vmatprep.subr.mxu0 0.0
    %1156 = vmatpush1.msra.mxu0 0.0
    %1157 = vmatprep.subr.mxu0 0.0
    %1158 = vmatpush1.msra.mxu0 0.0
    %1159 = vmatprep.subr.mxu0 0.0
    %1160 = vmatpush1.msra.mxu0 0.0
    %1161 = vmatprep.subr.mxu0 0.0
    %1162 = vmatpush1.msra.mxu0 0.0
    %1163 = vmatprep.subr.mxu0 0.0
    %1164 = vmatpush1.msra.mxu0 0.0
    %1165 = vmatprep.subr.mxu0 0.0
    %1166 = vmatpush1.msra.mxu0 0.0
    %1167 = vmatprep.subr.mxu0 0.0
    %1168 = vmatpush1.msra.mxu0 0.0
    %1169 = vmatprep.subr.mxu0 0.0
    %1170 = vmatpush1.msra.mxu0 0.0
    %1171 = vmatprep.subr.mxu0 0.0
    %1172 = vmatpush1.msra.mxu0 0.0
    %1173 = vmatprep.subr.mxu0 0.0
    %1174 = vmatpush1.msra.mxu0 0.0
    %1175 = vmatprep.subr.mxu0 0.0
    %1176 = vmatpush1.msra.mxu0 0.0
    %1177 = vmatprep.subr.mxu0 0.0
    %1178 = vmatpush1.msra.mxu0 0.0
    %1179 = vmatprep.subr.mxu0 0.0
    %1180 = vmatpush1.msra.mxu0 0.0
    %1181 = vmatprep.subr.mxu0 0.0
    %1182 = vmatpush1.msra.mxu0 0.0
    %1183 = vmatprep.subr.mxu0 0.0
    %1184 = vmatpush1.msra.mxu0 0.0
    %1185 = vmatprep.subr.mxu0 0.0
    %1186 = vmatpush1.msra.mxu0 0.0
    %1187 = vmatprep.subr.mxu0 0.0
    %1188 = vmatpush1.msra.mxu0 0.0
    %1189 = vmatprep.subr.mxu0 0.0
    %1190 = vmatpush1.msra.mxu0 0.0
    %1191 = vmatprep.subr.mxu0 0.0
    %1192 = vmatpush1.msra.mxu0 0.0
    %1193 = vmatprep.subr.mxu0 0.0
    %1194 = vmatpush1.msra.mxu0 0.0
    %1195 = vmatprep.subr.mxu0 0.0
    %1196 = vmatpush1.msra.mxu0 0.0
    %1197 = vmatprep.subr.mxu0 0.0
    %1198 = vmatpush1.msra.mxu0 0.0
    %1199 = vmatprep.subr.mxu0 0.0
    %1200 = vmatpush1.msra.mxu0 0.0
    %1201 = vmatprep.subr.mxu0 0.0
    %1202 = vmatpush1.msra.mxu0 0.0
    %1203 = vmatprep.subr.mxu0 0.0
    %1204 = vmatpush1.msra.mxu0 0.0
    %1205 = vmatprep.subr.mxu0 0.0
    %1206 = vmatpush1.msra.mxu0 0.0
    %1207 = vmatprep.subr.mxu0 0.0
    %1208 = vmatpush1.msra.mxu0 0.0
    %1209 = vmatprep.subr.mxu0 0.0
    %1210 = vmatpush1.msra.mxu0 0.0
    %1211 = vmatprep.subr.mxu0 0.0
    %1212 = vmatpush1.msra.mxu0 0.0
    %1213 = vmatprep.subr.mxu0 0.0
    %1214 = vmatpush1.msra.mxu0 0.0
    %1215 = vmatprep.subr.mxu0 0.0
    %1216 = vmatpush1.msra.mxu0 0.0
    %1217 = vmatprep.mubr.f32.mxu0 0.0
    %1218 = vmatmul.mubr.f32.gmra.mrb[0].mxu0 %v1151
    %v1219 = vpop.f32.mrb[0].mxu0
    %v1220 = vadd.f32 0.0, %v1219
    %v1221 = vpop.f32.mrb[0].mxu0
    %1222 = vdwg.mxu0
    %v1224 = vsel %vm48, %v775, 0
    %1226 = vmatprep.subr.mxu0 0.0
    %1227 = vmatpush1.msra.mxu0 %v46
    %1228 = vmatprep.subr.mxu0 0.0
    %1229 = vmatpush1.msra.mxu0 0.0
    %1230 = vmatprep.subr.mxu0 0.0
    %1231 = vmatpush1.msra.mxu0 0.0
    %1232 = vmatprep.subr.mxu0 0.0
    %1233 = vmatpush1.msra.mxu0 0.0
    %1234 = vmatprep.subr.mxu0 0.0
    %1235 = vmatpush1.msra.mxu0 0.0
    %1236 = vmatprep.subr.mxu0 0.0
    %1237 = vmatpush1.msra.mxu0 0.0
    %1238 = vmatprep.subr.mxu0 0.0
    %1239 = vmatpush1.msra.mxu0 0.0
    %1240 = vmatprep.subr.mxu0 0.0
    %1241 = vmatpush1.msra.mxu0 0.0
    %1242 = vmatprep.subr.mxu0 0.0
    %1243 = vmatpush1.msra.mxu0 0.0
    %1244 = vmatprep.subr.mxu0 0.0
    %1245 = vmatpush1.msra.mxu0 0.0
    %1246 = vmatprep.subr.mxu0 0.0
    %1247 = vmatpush1.msra.mxu0 0.0
    %1248 = vmatprep.subr.mxu0 0.0
    %1249 = vmatpush1.msra.mxu0 0.0
    %1250 = vmatprep.subr.mxu0 0.0
    %1251 = vmatpush1.msra.mxu0 0.0
    %1252 = vmatprep.subr.mxu0 0.0
    %1253 = vmatpush1.msra.mxu0 0.0
    %1254 = vmatprep.subr.mxu0 0.0
    %1255 = vmatpush1.msra.mxu0 0.0
    %1256 = vmatprep.subr.mxu0 0.0
    %1257 = vmatpush1.msra.mxu0 0.0
    %1258 = vmatprep.subr.mxu0 0.0
    %1259 = vmatpush1.msra.mxu0 0.0
    %1260 = vmatprep.subr.mxu0 0.0
    %1261 = vmatpush1.msra.mxu0 0.0
    %1262 = vmatprep.subr.mxu0 0.0
    %1263 = vmatpush1.msra.mxu0 0.0
    %1264 = vmatprep.subr.mxu0 0.0
    %1265 = vmatpush1.msra.mxu0 0.0
    %1266 = vmatprep.subr.mxu0 0.0
    %1267 = vmatpush1.msra.mxu0 0.0
    %1268 = vmatprep.subr.mxu0 0.0
    %1269 = vmatpush1.msra.mxu0 0.0
    %1270 = vmatprep.subr.mxu0 0.0
    %1271 = vmatpush1.msra.mxu0 0.0
    %1272 = vmatprep.subr.mxu0 0.0
    %1273 = vmatpush1.msra.mxu0 0.0
    %1274 = vmatprep.subr.mxu0 0.0
    %1275 = vmatpush1.msra.mxu0 0.0
    %1276 = vmatprep.subr.mxu0 0.0
    %1277 = vmatpush1.msra.mxu0 0.0
    %1278 = vmatprep.subr.mxu0 0.0
    %1279 = vmatpush1.msra.mxu0 0.0
    %1280 = vmatprep.subr.mxu0 0.0
    %1281 = vmatpush1.msra.mxu0 0.0
    %1282 = vmatprep.subr.mxu0 0.0
    %1283 = vmatpush1.msra.mxu0 0.0
    %1284 = vmatprep.subr.mxu0 0.0
    %1285 = vmatpush1.msra.mxu0 0.0
    %1286 = vmatprep.subr.mxu0 0.0
    %1287 = vmatpush1.msra.mxu0 0.0
    %1288 = vmatprep.subr.mxu0 0.0
    %1289 = vmatpush1.msra.mxu0 0.0
    %1290 = vmatprep.mubr.f32.mxu0 0.0
    %1291 = vmatmul.mubr.f32.gmra.mrb[0].mxu0 %v1224
    %v1292 = vpop.f32.mrb[0].mxu0
    %v1293 = vadd.f32 0.0, %v1292
    %v1294 = vpop.f32.mrb[0].mxu0
    %1295 = vdwg.mxu0
    %v1297 = vsel %vm48, %v776, 0
    %1299 = vmatprep.subr.mxu0 0.0
    %1300 = vmatpush1.msra.mxu0 %v47
    %1301 = vmatprep.subr.mxu0 0.0
    %1302 = vmatpush1.msra.mxu0 0.0
    %1303 = vmatprep.subr.mxu0 0.0
    %1304 = vmatpush1.msra.mxu0 0.0
    %1305 = vmatprep.subr.mxu0 0.0
    %1306 = vmatpush1.msra.mxu0 0.0
    %1307 = vmatprep.subr.mxu0 0.0
    %1308 = vmatpush1.msra.mxu0 0.0
    %1309 = vmatprep.subr.mxu0 0.0
    %1310 = vmatpush1.msra.mxu0 0.0
    %1311 = vmatprep.subr.mxu0 0.0
    %1312 = vmatpush1.msra.mxu0 0.0
    %1313 = vmatprep.subr.mxu0 0.0
    %1314 = vmatpush1.msra.mxu0 0.0
    %1315 = vmatprep.subr.mxu0 0.0
    %1316 = vmatpush1.msra.mxu0 0.0
    %1317 = vmatprep.subr.mxu0 0.0
    %1318 = vmatpush1.msra.mxu0 0.0
    %1319 = vmatprep.subr.mxu0 0.0
    %1320 = vmatpush1.msra.mxu0 0.0
    %1321 = vmatprep.subr.mxu0 0.0
    %1322 = vmatpush1.msra.mxu0 0.0
    %1323 = vmatprep.subr.mxu0 0.0
    %1324 = vmatpush1.msra.mxu0 0.0
    %1325 = vmatprep.subr.mxu0 0.0
    %1326 = vmatpush1.msra.mxu0 0.0
    %1327 = vmatprep.subr.mxu0 0.0
    %1328 = vmatpush1.msra.mxu0 0.0
    %1329 = vmatprep.subr.mxu0 0.0
    %1330 = vmatpush1.msra.mxu0 0.0
    %1331 = vmatprep.subr.mxu0 0.0
    %1332 = vmatpush1.msra.mxu0 0.0
    %1333 = vmatprep.subr.mxu0 0.0
    %1334 = vmatpush1.msra.mxu0 0.0
    %1335 = vmatprep.subr.mxu0 0.0
    %1336 = vmatpush1.msra.mxu0 0.0
    %1337 = vmatprep.subr.mxu0 0.0
    %1338 = vmatpush1.msra.mxu0 0.0
    %1339 = vmatprep.subr.mxu0 0.0
    %1340 = vmatpush1.msra.mxu0 0.0
    %1341 = vmatprep.subr.mxu0 0.0
    %1342 = vmatpush1.msra.mxu0 0.0
    %1343 = vmatprep.subr.mxu0 0.0
    %1344 = vmatpush1.msra.mxu0 0.0
    %1345 = vmatprep.subr.mxu0 0.0
    %1346 = vmatpush1.msra.mxu0 0.0
    %1347 = vmatprep.subr.mxu0 0.0
    %1348 = vmatpush1.msra.mxu0 0.0
    %1349 = vmatprep.subr.mxu0 0.0
    %1350 = vmatpush1.msra.mxu0 0.0
    %1351 = vmatprep.subr.mxu0 0.0
    %1352 = vmatpush1.msra.mxu0 0.0
    %1353 = vmatprep.subr.mxu0 0.0
    %1354 = vmatpush1.msra.mxu0 0.0
    %1355 = vmatprep.subr.mxu0 0.0
    %1356 = vmatpush1.msra.mxu0 0.0
    %1357 = vmatprep.subr.mxu0 0.0
    %1358 = vmatpush1.msra.mxu0 0.0
    %1359 = vmatprep.subr.mxu0 0.0
    %1360 = vmatpush1.msra.mxu0 0.0
    %1361 = vmatprep.subr.mxu0 0.0
    %1362 = vmatpush1.msra.mxu0 0.0
    %1363 = vmatprep.mubr.f32.mxu0 0.0
    %1364 = vmatmul.mubr.f32.gmra.mrb[0].mxu0 %v1297
    %v1365 = vpop.f32.mrb[0].mxu0
    %v1366 = vadd.f32 0.0, %v1365
    %v1367 = vpop.f32.mrb[0].mxu0
    %1368 = vdwg.mxu0
    %v1369 = vld [vmem:[%s3] sm:$0xff]
    %v1370 = vld [vmem:[%s3 + $0x8] sm:$0xff]
    %v1371 = vld [vmem:[%s3 + $0x10] sm:$0xff]
    %v1372 = vld [vmem:[%s3 + $0x18] sm:$0xff]
    %v1373 = vld [vmem:[%s3 + $0x20] sm:$0xff]
    %v1374 = vld [vmem:[%s3 + $0x28] sm:$0xff]
    %v1375 = vld [vmem:[%s3 + $0x30] sm:$0xff]
    %v1376 = vld [vmem:[%s3 + $0x38] sm:$0xff]
    %v1378 = vsel %vm48, %v855, 0
    %1380 = vmatprep.subr.mxu0 0.0
    %1381 = vmatpush1.msra.mxu0 %v1369
    %1382 = vmatprep.subr.mxu0 0.0
    %1383 = vmatpush1.msra.mxu0 0.0
    %1384 = vmatprep.subr.mxu0 0.0
    %1385 = vmatpush1.msra.mxu0 0.0
    %1386 = vmatprep.subr.mxu0 0.0
    %1387 = vmatpush1.msra.mxu0 0.0
    %1388 = vmatprep.subr.mxu0 0.0
    %1389 = vmatpush1.msra.mxu0 0.0
    %1390 = vmatprep.subr.mxu0 0.0
    %1391 = vmatpush1.msra.mxu0 0.0
    %1392 = vmatprep.subr.mxu0 0.0
    %1393 = vmatpush1.msra.mxu0 0.0
    %1394 = vmatprep.subr.mxu0 0.0
    %1395 = vmatpush1.msra.mxu0 0.0
    %1396 = vmatprep.subr.mxu0 0.0
    %1397 = vmatpush1.msra.mxu0 0.0
    %1398 = vmatprep.subr.mxu0 0.0
    %1399 = vmatpush1.msra.mxu0 0.0
    %1400 = vmatprep.subr.mxu0 0.0
    %1401 = vmatpush1.msra.mxu0 0.0
    %1402 = vmatprep.subr.mxu0 0.0
    %1403 = vmatpush1.msra.mxu0 0.0
    %1404 = vmatprep.subr.mxu0 0.0
    %1405 = vmatpush1.msra.mxu0 0.0
    %1406 = vmatprep.subr.mxu0 0.0
    %1407 = vmatpush1.msra.mxu0 0.0
    %1408 = vmatprep.subr.mxu0 0.0
    %1409 = vmatpush1.msra.mxu0 0.0
    %1410 = vmatprep.subr.mxu0 0.0
    %1411 = vmatpush1.msra.mxu0 0.0
    %1412 = vmatprep.subr.mxu0 0.0
    %1413 = vmatpush1.msra.mxu0 0.0
    %1414 = vmatprep.subr.mxu0 0.0
    %1415 = vmatpush1.msra.mxu0 0.0
    %1416 = vmatprep.subr.mxu0 0.0
    %1417 = vmatpush1.msra.mxu0 0.0
    %1418 = vmatprep.subr.mxu0 0.0
    %1419 = vmatpush1.msra.mxu0 0.0
    %1420 = vmatprep.subr.mxu0 0.0
    %1421 = vmatpush1.msra.mxu0 0.0
    %1422 = vmatprep.subr.mxu0 0.0
    %1423 = vmatpush1.msra.mxu0 0.0
    %1424 = vmatprep.subr.mxu0 0.0
    %1425 = vmatpush1.msra.mxu0 0.0
    %1426 = vmatprep.subr.mxu0 0.0
    %1427 = vmatpush1.msra.mxu0 0.0
    %1428 = vmatprep.subr.mxu0 0.0
    %1429 = vmatpush1.msra.mxu0 0.0
    %1430 = vmatprep.subr.mxu0 0.0
    %1431 = vmatpush1.msra.mxu0 0.0
    %1432 = vmatprep.subr.mxu0 0.0
    %1433 = vmatpush1.msra.mxu0 0.0
    %1434 = vmatprep.subr.mxu0 0.0
    %1435 = vmatpush1.msra.mxu0 0.0
    %1436 = vmatprep.subr.mxu0 0.0
    %1437 = vmatpush1.msra.mxu0 0.0
    %1438 = vmatprep.subr.mxu0 0.0
    %1439 = vmatpush1.msra.mxu0 0.0
    %1440 = vmatprep.subr.mxu0 0.0
    %1441 = vmatpush1.msra.mxu0 0.0
    %1442 = vmatprep.subr.mxu0 0.0
    %1443 = vmatpush1.msra.mxu0 0.0
    %1444 = vmatprep.mubr.f32.mxu0 0.0
    %1445 = vmatmul.mubr.f32.gmra.mrb[0].mxu0 %v1378
    %v1446 = vpop.f32.mrb[0].mxu0
    %v1447 = vadd.f32 0.0, %v1446
    %v1448 = vpop.f32.mrb[0].mxu0
    %1449 = vdwg.mxu0
    %v1451 = vsel %vm48, %v928, 0
    %1453 = vmatprep.subr.mxu0 0.0
    %1454 = vmatpush1.msra.mxu0 %v1370
    %1455 = vmatprep.subr.mxu0 0.0
    %1456 = vmatpush1.msra.mxu0 0.0
    %1457 = vmatprep.subr.mxu0 0.0
    %1458 = vmatpush1.msra.mxu0 0.0
    %1459 = vmatprep.subr.mxu0 0.0
    %1460 = vmatpush1.msra.mxu0 0.0
    %1461 = vmatprep.subr.mxu0 0.0
    %1462 = vmatpush1.msra.mxu0 0.0
    %1463 = vmatprep.subr.mxu0 0.0
    %1464 = vmatpush1.msra.mxu0 0.0
    %1465 = vmatprep.subr.mxu0 0.0
    %1466 = vmatpush1.msra.mxu0 0.0
    %1467 = vmatprep.subr.mxu0 0.0
    %1468 = vmatpush1.msra.mxu0 0.0
    %1469 = vmatprep.subr.mxu0 0.0
    %1470 = vmatpush1.msra.mxu0 0.0
    %1471 = vmatprep.subr.mxu0 0.0
    %1472 = vmatpush1.msra.mxu0 0.0
    %1473 = vmatprep.subr.mxu0 0.0
    %1474 = vmatpush1.msra.mxu0 0.0
    %1475 = vmatprep.subr.mxu0 0.0
    %1476 = vmatpush1.msra.mxu0 0.0
    %1477 = vmatprep.subr.mxu0 0.0
    %1478 = vmatpush1.msra.mxu0 0.0
    %1479 = vmatprep.subr.mxu0 0.0
    %1480 = vmatpush1.msra.mxu0 0.0
    %1481 = vmatprep.subr.mxu0 0.0
    %1482 = vmatpush1.msra.mxu0 0.0
    %1483 = vmatprep.subr.mxu0 0.0
    %1484 = vmatpush1.msra.mxu0 0.0
    %1485 = vmatprep.subr.mxu0 0.0
    %1486 = vmatpush1.msra.mxu0 0.0
    %1487 = vmatprep.subr.mxu0 0.0
    %1488 = vmatpush1.msra.mxu0 0.0
    %1489 = vmatprep.subr.mxu0 0.0
    %1490 = vmatpush1.msra.mxu0 0.0
    %1491 = vmatprep.subr.mxu0 0.0
    %1492 = vmatpush1.msra.mxu0 0.0
    %1493 = vmatprep.subr.mxu0 0.0
    %1494 = vmatpush1.msra.mxu0 0.0
    %1495 = vmatprep.subr.mxu0 0.0
    %1496 = vmatpush1.msra.mxu0 0.0
    %1497 = vmatprep.subr.mxu0 0.0
    %1498 = vmatpush1.msra.mxu0 0.0
    %1499 = vmatprep.subr.mxu0 0.0
    %1500 = vmatpush1.msra.mxu0 0.0
    %1501 = vmatprep.subr.mxu0 0.0
    %1502 = vmatpush1.msra.mxu0 0.0
    %1503 = vmatprep.subr.mxu0 0.0
    %1504 = vmatpush1.msra.mxu0 0.0
    %1505 = vmatprep.subr.mxu0 0.0
    %1506 = vmatpush1.msra.mxu0 0.0
    %1507 = vmatprep.subr.mxu0 0.0
    %1508 = vmatpush1.msra.mxu0 0.0
    %1509 = vmatprep.subr.mxu0 0.0
    %1510 = vmatpush1.msra.mxu0 0.0
    %1511 = vmatprep.subr.mxu0 0.0
    %1512 = vmatpush1.msra.mxu0 0.0
    %1513 = vmatprep.subr.mxu0 0.0
    %1514 = vmatpush1.msra.mxu0 0.0
    %1515 = vmatprep.subr.mxu0 0.0
    %1516 = vmatpush1.msra.mxu0 0.0
    %1517 = vmatprep.mubr.f32.mxu0 0.0
    %1518 = vmatmul.mubr.f32.gmra.mrb[0].mxu0 %v1451
    %v1519 = vpop.f32.mrb[0].mxu0
    %v1520 = vadd.f32 0.0, %v1519
    %v1521 = vpop.f32.mrb[0].mxu0
    %1522 = vdwg.mxu0
    %v1524 = vsel %vm48, %v1001, 0
    %1526 = vmatprep.subr.mxu0 0.0
    %1527 = vmatpush1.msra.mxu0 %v1371
    %1528 = vmatprep.subr.mxu0 0.0
    %1529 = vmatpush1.msra.mxu0 0.0
    %1530 = vmatprep.subr.mxu0 0.0
    %1531 = vmatpush1.msra.mxu0 0.0
    %1532 = vmatprep.subr.mxu0 0.0
    %1533 = vmatpush1.msra.mxu0 0.0
    %1534 = vmatprep.subr.mxu0 0.0
    %1535 = vmatpush1.msra.mxu0 0.0
    %1536 = vmatprep.subr.mxu0 0.0
    %1537 = vmatpush1.msra.mxu0 0.0
    %1538 = vmatprep.subr.mxu0 0.0
    %1539 = vmatpush1.msra.mxu0 0.0
    %1540 = vmatprep.subr.mxu0 0.0
    %1541 = vmatpush1.msra.mxu0 0.0
    %1542 = vmatprep.subr.mxu0 0.0
    %1543 = vmatpush1.msra.mxu0 0.0
    %1544 = vmatprep.subr.mxu0 0.0
    %1545 = vmatpush1.msra.mxu0 0.0
    %1546 = vmatprep.subr.mxu0 0.0
    %1547 = vmatpush1.msra.mxu0 0.0
    %1548 = vmatprep.subr.mxu0 0.0
    %1549 = vmatpush1.msra.mxu0 0.0
    %1550 = vmatprep.subr.mxu0 0.0
    %1551 = vmatpush1.msra.mxu0 0.0
    %1552 = vmatprep.subr.mxu0 0.0
    %1553 = vmatpush1.msra.mxu0 0.0
    %1554 = vmatprep.subr.mxu0 0.0
    %1555 = vmatpush1.msra.mxu0 0.0
    %1556 = vmatprep.subr.mxu0 0.0
    %1557 = vmatpush1.msra.mxu0 0.0
    %1558 = vmatprep.subr.mxu0 0.0
    %1559 = vmatpush1.msra.mxu0 0.0
    %1560 = vmatprep.subr.mxu0 0.0
    %1561 = vmatpush1.msra.mxu0 0.0
    %1562 = vmatprep.subr.mxu0 0.0
    %1563 = vmatpush1.msra.mxu0 0.0
    %1564 = vmatprep.subr.mxu0 0.0
    %1565 = vmatpush1.msra.mxu0 0.0
    %1566 = vmatprep.subr.mxu0 0.0
    %1567 = vmatpush1.msra.mxu0 0.0
    %1568 = vmatprep.subr.mxu0 0.0
    %1569 = vmatpush1.msra.mxu0 0.0
    %1570 = vmatprep.subr.mxu0 0.0
    %1571 = vmatpush1.msra.mxu0 0.0
    %1572 = vmatprep.subr.mxu0 0.0
    %1573 = vmatpush1.msra.mxu0 0.0
    %1574 = vmatprep.subr.mxu0 0.0
    %1575 = vmatpush1.msra.mxu0 0.0
    %1576 = vmatprep.subr.mxu0 0.0
    %1577 = vmatpush1.msra.mxu0 0.0
    %1578 = vmatprep.subr.mxu0 0.0
    %1579 = vmatpush1.msra.mxu0 0.0
    %1580 = vmatprep.subr.mxu0 0.0
    %1581 = vmatpush1.msra.mxu0 0.0
    %1582 = vmatprep.subr.mxu0 0.0
    %1583 = vmatpush1.msra.mxu0 0.0
    %1584 = vmatprep.subr.mxu0 0.0
    %1585 = vmatpush1.msra.mxu0 0.0
    %1586 = vmatprep.subr.mxu0 0.0
    %1587 = vmatpush1.msra.mxu0 0.0
    %1588 = vmatprep.subr.mxu0 0.0
    %1589 = vmatpush1.msra.mxu0 0.0
    %1590 = vmatprep.mubr.f32.mxu0 0.0
    %1591 = vmatmul.mubr.f32.gmra.mrb[0].mxu0 %v1524
    %v1592 = vpop.f32.mrb[0].mxu0
    %v1593 = vadd.f32 0.0, %v1592
    %v1594 = vpop.f32.mrb[0].mxu0
    %1595 = vdwg.mxu0
    %v1597 = vsel %vm48, %v1074, 0
    %1599 = vmatprep.subr.mxu0 0.0
    %1600 = vmatpush1.msra.mxu0 %v1372
    %1601 = vmatprep.subr.mxu0 0.0
    %1602 = vmatpush1.msra.mxu0 0.0
    %1603 = vmatprep.subr.mxu0 0.0
    %1604 = vmatpush1.msra.mxu0 0.0
    %1605 = vmatprep.subr.mxu0 0.0
    %1606 = vmatpush1.msra.mxu0 0.0
    %1607 = vmatprep.subr.mxu0 0.0
    %1608 = vmatpush1.msra.mxu0 0.0
    %1609 = vmatprep.subr.mxu0 0.0
    %1610 = vmatpush1.msra.mxu0 0.0
    %1611 = vmatprep.subr.mxu0 0.0
    %1612 = vmatpush1.msra.mxu0 0.0
    %1613 = vmatprep.subr.mxu0 0.0
    %1614 = vmatpush1.msra.mxu0 0.0
    %1615 = vmatprep.subr.mxu0 0.0
    %1616 = vmatpush1.msra.mxu0 0.0
    %1617 = vmatprep.subr.mxu0 0.0
    %1618 = vmatpush1.msra.mxu0 0.0
    %1619 = vmatprep.subr.mxu0 0.0
    %1620 = vmatpush1.msra.mxu0 0.0
    %1621 = vmatprep.subr.mxu0 0.0
    %1622 = vmatpush1.msra.mxu0 0.0
    %1623 = vmatprep.subr.mxu0 0.0
    %1624 = vmatpush1.msra.mxu0 0.0
    %1625 = vmatprep.subr.mxu0 0.0
    %1626 = vmatpush1.msra.mxu0 0.0
    %1627 = vmatprep.subr.mxu0 0.0
    %1628 = vmatpush1.msra.mxu0 0.0
    %1629 = vmatprep.subr.mxu0 0.0
    %1630 = vmatpush1.msra.mxu0 0.0
    %1631 = vmatprep.subr.mxu0 0.0
    %1632 = vmatpush1.msra.mxu0 0.0
    %1633 = vmatprep.subr.mxu0 0.0
    %1634 = vmatpush1.msra.mxu0 0.0
    %1635 = vmatprep.subr.mxu0 0.0
    %1636 = vmatpush1.msra.mxu0 0.0
    %1637 = vmatprep.subr.mxu0 0.0
    %1638 = vmatpush1.msra.mxu0 0.0
    %1639 = vmatprep.subr.mxu0 0.0
    %1640 = vmatpush1.msra.mxu0 0.0
    %1641 = vmatprep.subr.mxu0 0.0
    %1642 = vmatpush1.msra.mxu0 0.0
    %1643 = vmatprep.subr.mxu0 0.0
    %1644 = vmatpush1.msra.mxu0 0.0
    %1645 = vmatprep.subr.mxu0 0.0
    %1646 = vmatpush1.msra.mxu0 0.0
    %1647 = vmatprep.subr.mxu0 0.0
    %1648 = vmatpush1.msra.mxu0 0.0
    %1649 = vmatprep.subr.mxu0 0.0
    %1650 = vmatpush1.msra.mxu0 0.0
    %1651 = vmatprep.subr.mxu0 0.0
    %1652 = vmatpush1.msra.mxu0 0.0
    %1653 = vmatprep.subr.mxu0 0.0
    %1654 = vmatpush1.msra.mxu0 0.0
    %1655 = vmatprep.subr.mxu0 0.0
    %1656 = vmatpush1.msra.mxu0 0.0
    %1657 = vmatprep.subr.mxu0 0.0
    %1658 = vmatpush1.msra.mxu0 0.0
    %1659 = vmatprep.subr.mxu0 0.0
    %1660 = vmatpush1.msra.mxu0 0.0
    %1661 = vmatprep.subr.mxu0 0.0
    %1662 = vmatpush1.msra.mxu0 0.0
    %1663 = vmatprep.mubr.f32.mxu0 0.0
    %1664 = vmatmul.mubr.f32.gmra.mrb[0].mxu0 %v1597
    %v1665 = vpop.f32.mrb[0].mxu0
    %v1666 = vadd.f32 0.0, %v1665
    %v1667 = vpop.f32.mrb[0].mxu0
    %1668 = vdwg.mxu0
    %v1670 = vsel %vm48, %v1147, 0
    %1672 = vmatprep.subr.mxu0 0.0
    %1673 = vmatpush1.msra.mxu0 %v1373
    %1674 = vmatprep.subr.mxu0 0.0
    %1675 = vmatpush1.msra.mxu0 0.0
    %1676 = vmatprep.subr.mxu0 0.0
    %1677 = vmatpush1.msra.mxu0 0.0
    %1678 = vmatprep.subr.mxu0 0.0
    %1679 = vmatpush1.msra.mxu0 0.0
    %1680 = vmatprep.subr.mxu0 0.0
    %1681 = vmatpush1.msra.mxu0 0.0
    %1682 = vmatprep.subr.mxu0 0.0
    %1683 = vmatpush1.msra.mxu0 0.0
    %1684 = vmatprep.subr.mxu0 0.0
    %1685 = vmatpush1.msra.mxu0 0.0
    %1686 = vmatprep.subr.mxu0 0.0
    %1687 = vmatpush1.msra.mxu0 0.0
    %1688 = vmatprep.subr.mxu0 0.0
    %1689 = vmatpush1.msra.mxu0 0.0
    %1690 = vmatprep.subr.mxu0 0.0
    %1691 = vmatpush1.msra.mxu0 0.0
    %1692 = vmatprep.subr.mxu0 0.0
    %1693 = vmatpush1.msra.mxu0 0.0
    %1694 = vmatprep.subr.mxu0 0.0
    %1695 = vmatpush1.msra.mxu0 0.0
    %1696 = vmatprep.subr.mxu0 0.0
    %1697 = vmatpush1.msra.mxu0 0.0
    %1698 = vmatprep.subr.mxu0 0.0
    %1699 = vmatpush1.msra.mxu0 0.0
    %1700 = vmatprep.subr.mxu0 0.0
    %1701 = vmatpush1.msra.mxu0 0.0
    %1702 = vmatprep.subr.mxu0 0.0
    %1703 = vmatpush1.msra.mxu0 0.0
    %1704 = vmatprep.subr.mxu0 0.0
    %1705 = vmatpush1.msra.mxu0 0.0
    %1706 = vmatprep.subr.mxu0 0.0
    %1707 = vmatpush1.msra.mxu0 0.0
    %1708 = vmatprep.subr.mxu0 0.0
    %1709 = vmatpush1.msra.mxu0 0.0
    %1710 = vmatprep.subr.mxu0 0.0
    %1711 = vmatpush1.msra.mxu0 0.0
    %1712 = vmatprep.subr.mxu0 0.0
    %1713 = vmatpush1.msra.mxu0 0.0
    %1714 = vmatprep.subr.mxu0 0.0
    %1715 = vmatpush1.msra.mxu0 0.0
    %1716 = vmatprep.subr.mxu0 0.0
    %1717 = vmatpush1.msra.mxu0 0.0
    %1718 = vmatprep.subr.mxu0 0.0
    %1719 = vmatpush1.msra.mxu0 0.0
    %1720 = vmatprep.subr.mxu0 0.0
    %1721 = vmatpush1.msra.mxu0 0.0
    %1722 = vmatprep.subr.mxu0 0.0
    %1723 = vmatpush1.msra.mxu0 0.0
    %1724 = vmatprep.subr.mxu0 0.0
    %1725 = vmatpush1.msra.mxu0 0.0
    %1726 = vmatprep.subr.mxu0 0.0
    %1727 = vmatpush1.msra.mxu0 0.0
    %1728 = vmatprep.subr.mxu0 0.0
    %1729 = vmatpush1.msra.mxu0 0.0
    %1730 = vmatprep.subr.mxu0 0.0
    %1731 = vmatpush1.msra.mxu0 0.0
    %1732 = vmatprep.subr.mxu0 0.0
    %1733 = vmatpush1.msra.mxu0 0.0
    %1734 = vmatprep.subr.mxu0 0.0
    %1735 = vmatpush1.msra.mxu0 0.0
    %1736 = vmatprep.mubr.f32.mxu0 0.0
    %1737 = vmatmul.mubr.f32.gmra.mrb[0].mxu0 %v1670
    %v1738 = vpop.f32.mrb[0].mxu0
    %v1739 = vadd.f32 0.0, %v1738
    %v1740 = vpop.f32.mrb[0].mxu0
    %1741 = vdwg.mxu0
    %v1743 = vsel %vm48, %v1220, 0
    %1745 = vmatprep.subr.mxu0 0.0
    %1746 = vmatpush1.msra.mxu0 %v1374
    %1747 = vmatprep.subr.mxu0 0.0
    %1748 = vmatpush1.msra.mxu0 0.0
    %1749 = vmatprep.subr.mxu0 0.0
    %1750 = vmatpush1.msra.mxu0 0.0
    %1751 = vmatprep.subr.mxu0 0.0
    %1752 = vmatpush1.msra.mxu0 0.0
    %1753 = vmatprep.subr.mxu0 0.0
    %1754 = vmatpush1.msra.mxu0 0.0
    %1755 = vmatprep.subr.mxu0 0.0
    %1756 = vmatpush1.msra.mxu0 0.0
    %1757 = vmatprep.subr.mxu0 0.0
    %1758 = vmatpush1.msra.mxu0 0.0
    %1759 = vmatprep.subr.mxu0 0.0
    %1760 = vmatpush1.msra.mxu0 0.0
    %1761 = vmatprep.subr.mxu0 0.0
    %1762 = vmatpush1.msra.mxu0 0.0
    %1763 = vmatprep.subr.mxu0 0.0
    %1764 = vmatpush1.msra.mxu0 0.0
    %1765 = vmatprep.subr.mxu0 0.0
    %1766 = vmatpush1.msra.mxu0 0.0
    %1767 = vmatprep.subr.mxu0 0.0
    %1768 = vmatpush1.msra.mxu0 0.0
    %1769 = vmatprep.subr.mxu0 0.0
    %1770 = vmatpush1.msra.mxu0 0.0
    %1771 = vmatprep.subr.mxu0 0.0
    %1772 = vmatpush1.msra.mxu0 0.0
    %1773 = vmatprep.subr.mxu0 0.0
    %1774 = vmatpush1.msra.mxu0 0.0
    %1775 = vmatprep.subr.mxu0 0.0
    %1776 = vmatpush1.msra.mxu0 0.0
    %1777 = vmatprep.subr.mxu0 0.0
    %1778 = vmatpush1.msra.mxu0 0.0
    %1779 = vmatprep.subr.mxu0 0.0
    %1780 = vmatpush1.msra.mxu0 0.0
    %1781 = vmatprep.subr.mxu0 0.0
    %1782 = vmatpush1.msra.mxu0 0.0
    %1783 = vmatprep.subr.mxu0 0.0
    %1784 = vmatpush1.msra.mxu0 0.0
    %1785 = vmatprep.subr.mxu0 0.0
    %1786 = vmatpush1.msra.mxu0 0.0
    %1787 = vmatprep.subr.mxu0 0.0
    %1788 = vmatpush1.msra.mxu0 0.0
    %1789 = vmatprep.subr.mxu0 0.0
    %1790 = vmatpush1.msra.mxu0 0.0
    %1791 = vmatprep.subr.mxu0 0.0
    %1792 = vmatpush1.msra.mxu0 0.0
    %1793 = vmatprep.subr.mxu0 0.0
    %1794 = vmatpush1.msra.mxu0 0.0
    %1795 = vmatprep.subr.mxu0 0.0
    %1796 = vmatpush1.msra.mxu0 0.0
    %1797 = vmatprep.subr.mxu0 0.0
    %1798 = vmatpush1.msra.mxu0 0.0
    %1799 = vmatprep.subr.mxu0 0.0
    %1800 = vmatpush1.msra.mxu0 0.0
    %1801 = vmatprep.subr.mxu0 0.0
    %1802 = vmatpush1.msra.mxu0 0.0
    %1803 = vmatprep.subr.mxu0 0.0
    %1804 = vmatpush1.msra.mxu0 0.0
    %1805 = vmatprep.subr.mxu0 0.0
    %1806 = vmatpush1.msra.mxu0 0.0
    %1807 = vmatprep.subr.mxu0 0.0
    %1808 = vmatpush1.msra.mxu0 0.0
    %1809 = vmatprep.mubr.f32.mxu0 0.0
    %1810 = vmatmul.mubr.f32.gmra.mrb[0].mxu0 %v1743
    %v1811 = vpop.f32.mrb[0].mxu0
    %v1812 = vadd.f32 0.0, %v1811
    %v1813 = vpop.f32.mrb[0].mxu0
    %1814 = vdwg.mxu0
    %v1816 = vsel %vm48, %v1293, 0
    %1818 = vmatprep.subr.mxu0 0.0
    %1819 = vmatpush1.msra.mxu0 %v1375
    %1820 = vmatprep.subr.mxu0 0.0
    %1821 = vmatpush1.msra.mxu0 0.0
    %1822 = vmatprep.subr.mxu0 0.0
    %1823 = vmatpush1.msra.mxu0 0.0
    %1824 = vmatprep.subr.mxu0 0.0
    %1825 = vmatpush1.msra.mxu0 0.0
    %1826 = vmatprep.subr.mxu0 0.0
    %1827 = vmatpush1.msra.mxu0 0.0
    %1828 = vmatprep.subr.mxu0 0.0
    %1829 = vmatpush1.msra.mxu0 0.0
    %1830 = vmatprep.subr.mxu0 0.0
    %1831 = vmatpush1.msra.mxu0 0.0
    %1832 = vmatprep.subr.mxu0 0.0
    %1833 = vmatpush1.msra.mxu0 0.0
    %1834 = vmatprep.subr.mxu0 0.0
    %1835 = vmatpush1.msra.mxu0 0.0
    %1836 = vmatprep.subr.mxu0 0.0
    %1837 = vmatpush1.msra.mxu0 0.0
    %1838 = vmatprep.subr.mxu0 0.0
    %1839 = vmatpush1.msra.mxu0 0.0
    %1840 = vmatprep.subr.mxu0 0.0
    %1841 = vmatpush1.msra.mxu0 0.0
    %1842 = vmatprep.subr.mxu0 0.0
    %1843 = vmatpush1.msra.mxu0 0.0
    %1844 = vmatprep.subr.mxu0 0.0
    %1845 = vmatpush1.msra.mxu0 0.0
    %1846 = vmatprep.subr.mxu0 0.0
    %1847 = vmatpush1.msra.mxu0 0.0
    %1848 = vmatprep.subr.mxu0 0.0
    %1849 = vmatpush1.msra.mxu0 0.0
    %1850 = vmatprep.subr.mxu0 0.0
    %1851 = vmatpush1.msra.mxu0 0.0
    %1852 = vmatprep.subr.mxu0 0.0
    %1853 = vmatpush1.msra.mxu0 0.0
    %1854 = vmatprep.subr.mxu0 0.0
    %1855 = vmatpush1.msra.mxu0 0.0
    %1856 = vmatprep.subr.mxu0 0.0
    %1857 = vmatpush1.msra.mxu0 0.0
    %1858 = vmatprep.subr.mxu0 0.0
    %1859 = vmatpush1.msra.mxu0 0.0
    %1860 = vmatprep.subr.mxu0 0.0
    %1861 = vmatpush1.msra.mxu0 0.0
    %1862 = vmatprep.subr.mxu0 0.0
    %1863 = vmatpush1.msra.mxu0 0.0
    %1864 = vmatprep.subr.mxu0 0.0
    %1865 = vmatpush1.msra.mxu0 0.0
    %1866 = vmatprep.subr.mxu0 0.0
    %1867 = vmatpush1.msra.mxu0 0.0
    %1868 = vmatprep.subr.mxu0 0.0
    %1869 = vmatpush1.msra.mxu0 0.0
    %1870 = vmatprep.subr.mxu0 0.0
    %1871 = vmatpush1.msra.mxu0 0.0
    %1872 = vmatprep.subr.mxu0 0.0
    %1873 = vmatpush1.msra.mxu0 0.0
    %1874 = vmatprep.subr.mxu0 0.0
    %1875 = vmatpush1.msra.mxu0 0.0
    %1876 = vmatprep.subr.mxu0 0.0
    %1877 = vmatpush1.msra.mxu0 0.0
    %1878 = vmatprep.subr.mxu0 0.0
    %1879 = vmatpush1.msra.mxu0 0.0
    %1880 = vmatprep.subr.mxu0 0.0
    %1881 = vmatpush1.msra.mxu0 0.0
    %1882 = vmatprep.mubr.f32.mxu0 0.0
    %1883 = vmatmul.mubr.f32.gmra.mrb[0].mxu0 %v1816
    %v1884 = vpop.f32.mrb[0].mxu0
    %v1885 = vadd.f32 0.0, %v1884
    %v1886 = vpop.f32.mrb[0].mxu0
    %1887 = vdwg.mxu0
    %v1889 = vsel %vm48, %v1366, 0
    %1891 = vmatprep.subr.mxu0 0.0
    %1892 = vmatpush1.msra.mxu0 %v1376
    %1893 = vmatprep.subr.mxu0 0.0
    %1894 = vmatpush1.msra.mxu0 0.0
    %1895 = vmatprep.subr.mxu0 0.0
    %1896 = vmatpush1.msra.mxu0 0.0
    %1897 = vmatprep.subr.mxu0 0.0
    %1898 = vmatpush1.msra.mxu0 0.0
    %1899 = vmatprep.subr.mxu0 0.0
    %1900 = vmatpush1.msra.mxu0 0.0
    %1901 = vmatprep.subr.mxu0 0.0
    %1902 = vmatpush1.msra.mxu0 0.0
    %1903 = vmatprep.subr.mxu0 0.0
    %1904 = vmatpush1.msra.mxu0 0.0
    %1905 = vmatprep.subr.mxu0 0.0
    %1906 = vmatpush1.msra.mxu0 0.0
    %1907 = vmatprep.subr.mxu0 0.0
    %1908 = vmatpush1.msra.mxu0 0.0
    %1909 = vmatprep.subr.mxu0 0.0
    %1910 = vmatpush1.msra.mxu0 0.0
    %1911 = vmatprep.subr.mxu0 0.0
    %1912 = vmatpush1.msra.mxu0 0.0
    %1913 = vmatprep.subr.mxu0 0.0
    %1914 = vmatpush1.msra.mxu0 0.0
    %1915 = vmatprep.subr.mxu0 0.0
    %1916 = vmatpush1.msra.mxu0 0.0
    %1917 = vmatprep.subr.mxu0 0.0
    %1918 = vmatpush1.msra.mxu0 0.0
    %1919 = vmatprep.subr.mxu0 0.0
    %1920 = vmatpush1.msra.mxu0 0.0
    %1921 = vmatprep.subr.mxu0 0.0
    %1922 = vmatpush1.msra.mxu0 0.0
    %1923 = vmatprep.subr.mxu0 0.0
    %1924 = vmatpush1.msra.mxu0 0.0
    %1925 = vmatprep.subr.mxu0 0.0
    %1926 = vmatpush1.msra.mxu0 0.0
    %1927 = vmatprep.subr.mxu0 0.0
    %1928 = vmatpush1.msra.mxu0 0.0
    %1929 = vmatprep.subr.mxu0 0.0
    %1930 = vmatpush1.msra.mxu0 0.0
    %1931 = vmatprep.subr.mxu0 0.0
    %1932 = vmatpush1.msra.mxu0 0.0
    %1933 = vmatprep.subr.mxu0 0.0
    %1934 = vmatpush1.msra.mxu0 0.0
    %1935 = vmatprep.subr.mxu0 0.0
    %1936 = vmatpush1.msra.mxu0 0.0
    %1937 = vmatprep.subr.mxu0 0.0
    %1938 = vmatpush1.msra.mxu0 0.0
    %1939 = vmatprep.subr.mxu0 0.0
    %1940 = vmatpush1.msra.mxu0 0.0
    %1941 = vmatprep.subr.mxu0 0.0
    %1942 = vmatpush1.msra.mxu0 0.0
    %1943 = vmatprep.subr.mxu0 0.0
    %1944 = vmatpush1.msra.mxu0 0.0
    %1945 = vmatprep.subr.mxu0 0.0
    %1946 = vmatpush1.msra.mxu0 0.0
    %1947 = vmatprep.subr.mxu0 0.0
    %1948 = vmatpush1.msra.mxu0 0.0
    %1949 = vmatprep.subr.mxu0 0.0
    %1950 = vmatpush1.msra.mxu0 0.0
    %1951 = vmatprep.subr.mxu0 0.0
    %1952 = vmatpush1.msra.mxu0 0.0
    %1953 = vmatprep.subr.mxu0 0.0
    %1954 = vmatpush1.msra.mxu0 0.0
    %1955 = vmatprep.mubr.f32.mxu0 0.0
    %1956 = vmatmul.mubr.f32.gmra.mrb[0].mxu0 %v1889
    %v1957 = vpop.f32.mrb[0].mxu0
    %v1958 = vadd.f32 0.0, %v1957
    %v1959 = vpop.f32.mrb[0].mxu0
    %1960 = vdwg.mxu0
    %vm1961 = vcmask 261120
    %v1962 = vsel %vm1961, %v1447, 0.0
    %v1963 = vsel %vm1961, %v1520, 0.0
    %v1964 = vadd.f32 %v1962, %v1963
    %v1965 = vsel %vm1961, %v1593, 0.0
    %v1966 = vadd.f32 %v1964, %v1965
    %v1967 = vsel %vm1961, %v1666, 0.0
    %v1968 = vadd.f32 %v1966, %v1967
    %v1969 = vsel %vm1961, %v1739, 0.0
    %v1970 = vsel %vm1961, %v1812, 0.0
    %v1971 = vadd.f32 %v1969, %v1970
    %v1972 = vsel %vm1961, %v1885, 0.0
    %v1973 = vadd.f32 %v1971, %v1972
    %v1974 = vsel %vm1961, %v1958, 0.0
    %v1975 = vadd.f32 %v1973, %v1974
    %v1976 = vld [vmem:[%s4] sm:$0x1]
    %v1978 = vlaneseq
    %v1979 = vshrl.u32 %v1978, 7
    %v1980 = vsub.s32 0, %v1979
    %v1981 = vrot.slane %v1976, %v1980
    %v1983 = vadd.f32 %v1968, %v1981
    %v1984 = vadd.f32 %v1975, %v1981
    %1985 = vst.msk [vmem:[#allocation2] sm:$0xff] %vm1961, %v1983
    %1986 = vst.msk [vmem:[#allocation2 + $0x8] sm:$0xff] %vm1961, %v1984
    // Predicated region
    $region22: #{attention_layer.3} parent=1 // pred_check
      _
    $region23: #{attention_layer.3} parent=1 // pred_check_branch
      %1988 = sbr.rel (0) target = $region25
    $region24: #{attention_layer.3} parent=1 // pred_region
      %s1990 = ssub.s32 256, 256
      %1991 = vsyncadd [#allocation3], %s1990
      %s1992 = sshll.u32 [#allocation2], 4
      %s1993 = int_to_ptr.vmem [resolvable:$true] %s1992
      %1998 = dma.vmem_to_hbm [thread:$0]  %s1993, 256, %s5, [#allocation3], 128, 128, 8
    $region25: #{attention_layer.3} parent=1 // pred_fallthru
      _
    // Predicated region
    $region26: #{attention_layer.3} parent=1 // pred_check
      _
    $region27: #{attention_layer.3} parent=1 // pred_check_branch
      %2000 = sbr.rel (0) target = $region29
    $region28: #{attention_layer.3} parent=1 // pred_region
      %s2002 = ssub.s32 1024, 1024
      %2003 = vsyncadd [#allocation5], %s2002
      %s2004 = sshll.u32 [#allocation4], 4
      %s2005 = int_to_ptr.vmem [resolvable:$true] %s2004
      %2010 = dma.vmem_to_hbm [thread:$0]  %s2005, 1024, %s6, [#allocation5], 128, 128, 8
    $region29: #{attention_layer.3} parent=1 // pred_fallthru
      _
    // Predicated region
    $region30: #{attention_layer.3} parent=1 // pred_check
      _
    $region31: #{attention_layer.3} parent=1 // pred_check_branch
      %2012 = sbr.rel (0) target = $region33
    $region32: #{attention_layer.3} parent=1 // pred_region
      %2013 = dma.done [#allocation3], 256
    $region33: #{attention_layer.3} parent=1 // pred_fallthru
      _
    // Predicated region
    $region34: #{attention_layer.3} parent=1 // pred_check
      _
    $region35: #{attention_layer.3} parent=1 // pred_check_branch
      %2015 = sbr.rel (0) target = $region37
    $region36: #{attention_layer.3} parent=1 // pred_region
      %2016 = dma.done [#allocation5], 1024
    $region37: #{attention_layer.3} parent=1 // pred_fallthru
      _
    %2017 = vsyncpa [#allocation3], 1
    %2018 = vsyncpa [#allocation5], 1

</llo_original>
